<compile_context>
chip_gen: v7x
topology: tpu7x:2x2x1
jax: 0.10.0
libtpu: 0.0.40
codegen_flags: <defaults>
</compile_context>

<pallas_src>
import jax
import jax.numpy as jnp
from jax.experimental import pallas as pl
from jax.experimental.pallas import tpu as pltpu


# Lane-padded layer widths (multiples of 128).
D_IN = 784
H2, H3, D_OUT = 64, 32, 10
H2P, H3P, D_OUTP = 128, 128, 128


def mlp_kernel(x_ref, w2_ref, b2_ref, w3_ref, b3_ref, wo_ref, bo_ref, o_ref):
    # x / weights are bf16; matmuls accumulate in f32 on the MXU.
    x = x_ref[...]
    z2 = jnp.dot(x, w2_ref[...], preferred_element_type=jnp.float32) + b2_ref[...]
    a2 = jax.nn.sigmoid(z2).astype(jnp.bfloat16)          # sigmoid in f32 (EUP)
    z3 = jnp.dot(a2, w3_ref[...], preferred_element_type=jnp.float32) + b3_ref[...]
    a3 = jax.nn.sigmoid(z3).astype(jnp.bfloat16)
    zo = jnp.dot(a3, wo_ref[...], preferred_element_type=jnp.float32) + bo_ref[...]
    o_ref[...] = zo.astype(o_ref.dtype)


def _pad2(a, rows, cols, dtype):
    r, c = a.shape
    return jnp.pad(a, ((0, rows - r), (0, cols - c))).astype(dtype)


def net_forward(x, w2, b2, w3, b3, wo, bo, *, tb=256):
    """x: (B, 784) float32. Weights are (in, out); biases are (1, out).

    Returns (B, 10) float32 logits, matching the PyTorch forward pass.
    """
    B = x.shape[0]
    bf16, f32 = jnp.bfloat16, jnp.float32

    # Pad batch to a multiple of the tile; padded rows are zeros and sliced off.
    n_tiles = pl.cdiv(B, tb)
    Bp = n_tiles * tb
    xp = jnp.pad(x, ((0, Bp - B), (0, 0))).astype(bf16)

    # Zero-pad narrow dims to lane-dense (128) widths; weights in bf16,
    # biases stay f32 (added after the f32-accumulated matmul).
    w2p = _pad2(w2, D_IN, H2P, bf16)
    b2p = _pad2(b2, 1, H2P, f32)
    w3p = _pad2(w3, H2P, H3P, bf16)
    b3p = _pad2(b3, 1, H3P, f32)
    wop = _pad2(wo, H3P, D_OUTP, bf16)
    bop = _pad2(bo, 1, D_OUTP, f32)

    # Resident-in-VMEM specs (constant index map -> DMA'd once, never rotated).
    resident = lambda shape: pl.BlockSpec(shape, lambda i: (0, 0))

    weight_bytes = sum(int(a.size) * a.dtype.itemsize
                       for a in (w2p, b2p, w3p, b3p, wop, bop))
    cost = pl.CostEstimate(
        flops=2 * Bp * (D_IN * H2P + H2P * H3P + H3P * D_OUTP),
        transcendentals=Bp * (H2P + H3P),
        bytes_accessed=int(xp.size) * 2 + weight_bytes + Bp * D_OUTP * 4,
    )

    out_p = pl.pallas_call(
        mlp_kernel,
        out_shape=jax.ShapeDtypeStruct((Bp, D_OUTP), jnp.float32),
        grid=(n_tiles,),
        in_specs=[
            pl.BlockSpec((tb, D_IN), lambda i: (i, 0)),    # x tile: pipelined
            resident(w2p.shape), resident(b2p.shape),
            resident(w3p.shape), resident(b3p.shape),
            resident(wop.shape), resident(bop.shape),
        ],
        out_specs=pl.BlockSpec((tb, D_OUTP), lambda i: (i, 0)),
        compiler_params=pltpu.CompilerParams(
            dimension_semantics=("parallel",),
        ),
        cost_estimate=cost,
    )(xp, w2p, b2p, w3p, b3p, wop, bop)

    return out_p[:B, :D_OUT]


def init_linear(key, fan_in, fan_out):
    """Deterministic PyTorch-style uniform(-1/sqrt(fan_in), 1/sqrt(fan_in)) init.

    Weight returned as (in, out) (transposed vs torch's (out, in)); bias (1, out).
    """
    kw, kb = jax.random.split(key)
    bound = 1.0 / jnp.sqrt(fan_in)
    w = jax.random.uniform(kw, (fan_in, fan_out), jnp.float32, -bound, bound)
    b = jax.random.uniform(kb, (1, fan_out), jnp.float32, -bound, bound)
    return w, b


if __name__ == "__main__":
    key = jax.random.PRNGKey(0)
    kx, k2, k3, ko = jax.random.split(key, 4)

    batch = 8
    x = jax.random.normal(kx, (batch, 784), jnp.float32)

    w2, b2 = init_linear(k2, 784, 64)
    w3, b3 = init_linear(k3, 64, 32)
    wo, bo = init_linear(ko, 32, 10)

    out = jax.block_until_ready(net_forward(x, w2, b2, w3, b3, wo, bo))

    # Pure-JAX reference mirroring the kernel's bf16 matmul inputs / f32 accum.
    bf = jnp.bfloat16
    z2 = jnp.dot(x.astype(bf), w2.astype(bf), preferred_element_type=jnp.float32) + b2
    a2 = jax.nn.sigmoid(z2)
    z3 = jnp.dot(a2.astype(bf), w3.astype(bf), preferred_element_type=jnp.float32) + b3
    a3 = jax.nn.sigmoid(z3)
    ref = jnp.dot(a3.astype(bf), wo.astype(bf), preferred_element_type=jnp.float32) + bo

    assert out.shape == (batch, 10)
    assert jnp.allclose(out, ref, atol=1e-3, rtol=1e-3), float(jnp.max(jnp.abs(out - ref)))

    print("KERNEL_OK")
</pallas_src>

<mosaic_0001>
module attributes {stable_mosaic.version = 11 : i64} {
  func.func @mlp_kernel(%arg0: i32, %arg1: memref<256x784xbf16, #tpu.memory_space<vmem>>, %arg2: memref<784x128xbf16, #tpu.memory_space<vmem>>, %arg3: memref<1x128xf32, #tpu.memory_space<vmem>>, %arg4: memref<128x128xbf16, #tpu.memory_space<vmem>>, %arg5: memref<1x128xf32, #tpu.memory_space<vmem>>, %arg6: memref<128x128xbf16, #tpu.memory_space<vmem>>, %arg7: memref<1x128xf32, #tpu.memory_space<vmem>>, %arg8: memref<256x128xf32, #tpu.memory_space<vmem>>) attributes {dimension_semantics = [#tpu.dimension_semantics<parallel>], iteration_bounds = array<i64: 1>, scalar_prefetch = 0 : i64, scratch_operands = 0 : i64, tpu.core_type = #tpu.core_type<tc>, window_params = [{transform_indices = @transform_0, window_bounds = array<i64: 256, 784>}, {pipeline_mode = #tpu.pipeline_mode<synchronous>, transform_indices = @transform_1, window_bounds = array<i64: 784, 128>}, {pipeline_mode = #tpu.pipeline_mode<synchronous>, transform_indices = @transform_2, window_bounds = array<i64: 1, 128>}, {pipeline_mode = #tpu.pipeline_mode<synchronous>, transform_indices = @transform_3, window_bounds = array<i64: 128, 128>}, {pipeline_mode = #tpu.pipeline_mode<synchronous>, transform_indices = @transform_4, window_bounds = array<i64: 1, 128>}, {pipeline_mode = #tpu.pipeline_mode<synchronous>, transform_indices = @transform_5, window_bounds = array<i64: 128, 128>}, {pipeline_mode = #tpu.pipeline_mode<synchronous>, transform_indices = @transform_6, window_bounds = array<i64: 1, 128>}, {transform_indices = @transform_7, window_bounds = array<i64: 256, 128>}]} {
    %c0 = arith.constant 0 : index
    %c0_0 = arith.constant 0 : index
    %0 = vector.load %arg1[%c0, %c0_0] : memref<256x784xbf16, #tpu.memory_space<vmem>>, vector<256x784xbf16>
    %c0_1 = arith.constant 0 : index
    %c0_2 = arith.constant 0 : index
    %1 = vector.load %arg2[%c0_1, %c0_2] : memref<784x128xbf16, #tpu.memory_space<vmem>>, vector<784x128xbf16>
    %cst = arith.constant dense<0.000000e+00> : vector<256x128xf32>
    %2 = tpu.matmul %0, %1, %cst {dimension_numbers = #tpu.dot_dimension_numbers<[1], [0], [0], [1], [0, 0, 1, 1], [], []>} : vector<256x784xbf16>, vector<784x128xbf16>, vector<256x128xf32> -> vector<256x128xf32>
    %c0_3 = arith.constant 0 : index
    %c0_4 = arith.constant 0 : index
    %3 = vector.load %arg3[%c0_3, %c0_4] : memref<1x128xf32, #tpu.memory_space<vmem>>, vector<1x128xf32>
    %4 = vector.broadcast %3 : vector<1x128xf32> to vector<256x128xf32>
    %5 = arith.addf %2, %4 : vector<256x128xf32>
    %6 = arith.negf %5 : vector<256x128xf32>
    %7 = math.exp %6 : vector<256x128xf32>
    %cst_5 = arith.constant 1.000000e+00 : f32
    %8 = vector.broadcast %cst_5 : f32 to vector<256x128xf32>
    %9 = arith.addf %8, %7 : vector<256x128xf32>
    %10 = arith.divf %8, %9 : vector<256x128xf32>
    %11 = arith.truncf %10 : vector<256x128xf32> to vector<256x128xbf16>
    %c0_6 = arith.constant 0 : index
    %c0_7 = arith.constant 0 : index
    %12 = vector.load %arg4[%c0_6, %c0_7] : memref<128x128xbf16, #tpu.memory_space<vmem>>, vector<128x128xbf16>
    %cst_8 = arith.constant dense<0.000000e+00> : vector<256x128xf32>
    %13 = tpu.matmul %11, %12, %cst_8 {dimension_numbers = #tpu.dot_dimension_numbers<[1], [0], [0], [1], [0, 0, 1, 1], [], []>} : vector<256x128xbf16>, vector<128x128xbf16>, vector<256x128xf32> -> vector<256x128xf32>
    %c0_9 = arith.constant 0 : index
    %c0_10 = arith.constant 0 : index
    %14 = vector.load %arg5[%c0_9, %c0_10] : memref<1x128xf32, #tpu.memory_space<vmem>>, vector<1x128xf32>
    %15 = vector.broadcast %14 : vector<1x128xf32> to vector<256x128xf32>
    %16 = arith.addf %13, %15 : vector<256x128xf32>
    %17 = arith.negf %16 : vector<256x128xf32>
    %18 = math.exp %17 : vector<256x128xf32>
    %cst_11 = arith.constant 1.000000e+00 : f32
    %19 = vector.broadcast %cst_11 : f32 to vector<256x128xf32>
    %20 = arith.addf %19, %18 : vector<256x128xf32>
    %21 = arith.divf %19, %20 : vector<256x128xf32>
    %22 = arith.truncf %21 : vector<256x128xf32> to vector<256x128xbf16>
    %c0_12 = arith.constant 0 : index
    %c0_13 = arith.constant 0 : index
    %23 = vector.load %arg6[%c0_12, %c0_13] : memref<128x128xbf16, #tpu.memory_space<vmem>>, vector<128x128xbf16>
    %cst_14 = arith.constant dense<0.000000e+00> : vector<256x128xf32>
    %24 = tpu.matmul %22, %23, %cst_14 {dimension_numbers = #tpu.dot_dimension_numbers<[1], [0], [0], [1], [0, 0, 1, 1], [], []>} : vector<256x128xbf16>, vector<128x128xbf16>, vector<256x128xf32> -> vector<256x128xf32>
    %c0_15 = arith.constant 0 : index
    %c0_16 = arith.constant 0 : index
    %25 = vector.load %arg7[%c0_15, %c0_16] : memref<1x128xf32, #tpu.memory_space<vmem>>, vector<1x128xf32>
    %26 = vector.broadcast %25 : vector<1x128xf32> to vector<256x128xf32>
    %27 = arith.addf %24, %26 : vector<256x128xf32>
    %c0_17 = arith.constant 0 : index
    %c0_18 = arith.constant 0 : index
    %28 = vector.load %arg8[%c0_17, %c0_18] : memref<256x128xf32, #tpu.memory_space<vmem>>, vector<256x128xf32>
    tpu.vector_store %arg8[%c0_17, %c0_18], %27 {strides = array<i32>} : memref<256x128xf32, #tpu.memory_space<vmem>>, vector<256x128xf32>,
    return
  }
  func.func @transform_0(%arg0: i32) -> (i32, i32) {
    %c0_i32 = arith.constant 0 : i32
    %c0_i32_0 = arith.constant 0 : i32
    return %arg0, %c0_i32 : i32, i32
  }
  func.func @transform_1(%arg0: i32) -> (i32, i32) {
    %c0_i32 = arith.constant 0 : i32
    %c0_i32_0 = arith.constant 0 : i32
    %c0_i32_1 = arith.constant 0 : i32
    return %c0_i32, %c0_i32_0 : i32, i32
  }
  func.func @transform_2(%arg0: i32) -> (i32, i32) {
    %c0_i32 = arith.constant 0 : i32
    %c0_i32_0 = arith.constant 0 : i32
    %c0_i32_1 = arith.constant 0 : i32
    return %c0_i32, %c0_i32_0 : i32, i32
  }
  func.func @transform_3(%arg0: i32) -> (i32, i32) {
    %c0_i32 = arith.constant 0 : i32
    %c0_i32_0 = arith.constant 0 : i32
    %c0_i32_1 = arith.constant 0 : i32
    return %c0_i32, %c0_i32_0 : i32, i32
  }
  func.func @transform_4(%arg0: i32) -> (i32, i32) {
    %c0_i32 = arith.constant 0 : i32
    %c0_i32_0 = arith.constant 0 : i32
    %c0_i32_1 = arith.constant 0 : i32
    return %c0_i32, %c0_i32_0 : i32, i32
  }
  func.func @transform_5(%arg0: i32) -> (i32, i32) {
    %c0_i32 = arith.constant 0 : i32
    %c0_i32_0 = arith.constant 0 : i32
    %c0_i32_1 = arith.constant 0 : i32
    return %c0_i32, %c0_i32_0 : i32, i32
  }
  func.func @transform_6(%arg0: i32) -> (i32, i32) {
    %c0_i32 = arith.constant 0 : i32
    %c0_i32_0 = arith.constant 0 : i32
    %c0_i32_1 = arith.constant 0 : i32
    return %c0_i32, %c0_i32_0 : i32, i32
  }
  func.func @transform_7(%arg0: i32) -> (i32, i32) {
    %c0_i32 = arith.constant 0 : i32
    %c0_i32_0 = arith.constant 0 : i32
    return %arg0, %c0_i32 : i32, i32
  }
}

</mosaic_0001>

<llo_original>
// kernel: tpu_custom_call.1
$region0: #{tpu_custom_call.1}
  #allocation0 [shape = 'u32[]', space=smem, size = 0x4, offset = 0x4, fixed_abs, tag = 'smem constant byte address 0x4 - core index']
  #allocation1 [shape = 'u32[144,128]{1,0:T(1,128)}', space=vmem, size = 0x12000, scoped, tag = 'internal scratch']
  %s0 = inlined_call_operand.vmem [shape: bf16[256,784], index: 0, kind: input, shape index: {}]
  %s1 = inlined_call_operand.vmem [shape: bf16[784,128], index: 1, kind: input, shape index: {}]
  %s2 = inlined_call_operand.vmem [shape: f32[1,128], index: 2, kind: input, shape index: {}]
  %s3 = inlined_call_operand.vmem [shape: bf16[128,128], index: 3, kind: input, shape index: {}]
  %s4 = inlined_call_operand.vmem [shape: f32[1,128], index: 4, kind: input, shape index: {}]
  %s5 = inlined_call_operand.vmem [shape: bf16[128,128], index: 5, kind: input, shape index: {}]
  %s6 = inlined_call_operand.vmem [shape: f32[1,128], index: 6, kind: input, shape index: {}]
  %s7 = inlined_call_operand.hbm [shape: f32[256,128], index: 7, kind: output, shape index: {}]
  %s8 = sld [smem:[#allocation0]]
  $region38: #{tpu_custom_call.1} parent=0
    _
  %s10 = ssub.s32 1, %s8
  %s11 = scalar_select 0, %s10, %s8
  $region1: #{tpu_custom_call.1} parent=0
    #allocation2 [shape = 'u8[131072]{0}', space=vmem, size = 0x20000, scoped, tag = 'output window, operand 0, single buffered']
    #allocation3 [shape = 's32[1]{0}', space=sflag, size = 0x4, scoped, tag = 'scoped memory for tpu_custom_call.1']
    %12 = vsyncpa [#allocation3], 0
    // Predicated region
    $region2: #{tpu_custom_call.1} parent=1 // pred_check
      _
    $region3: #{tpu_custom_call.1} parent=1 // pred_check_branch
      %14 = sbr.rel (0) target = $region5
    $region4: #{tpu_custom_call.1} parent=1 // pred_region
      _
    $region5: #{tpu_custom_call.1} parent=1 // pred_fallthru
      _
    // Predicated region
    $region6: #{tpu_custom_call.1} parent=1 // pred_check
      _
    $region7: #{tpu_custom_call.1} parent=1 // pred_check_branch
      %16 = sbr.rel (0) target = $region9
    $region8: #{tpu_custom_call.1} parent=1 // pred_region
      _
    $region9: #{tpu_custom_call.1} parent=1 // pred_fallthru
      _
    // Predicated region
    $region10: #{tpu_custom_call.1} parent=1 // pred_check
      _
    $region11: #{tpu_custom_call.1} parent=1 // pred_check_branch
      %18 = sbr.rel (0) target = $region13
    $region12: #{tpu_custom_call.1} parent=1 // pred_region
      _
    $region13: #{tpu_custom_call.1} parent=1 // pred_fallthru
      _
    // Predicated region
    $region14: #{tpu_custom_call.1} parent=1 // pred_check
      _
    $region15: #{tpu_custom_call.1} parent=1 // pred_check_branch
      %20 = sbr.rel (0) target = $region17
    $region16: #{tpu_custom_call.1} parent=1 // pred_region
      _
    $region17: #{tpu_custom_call.1} parent=1 // pred_fallthru
      _
    // Predicated region
    $region18: #{tpu_custom_call.1} parent=1 // pred_check
      _
    $region19: #{tpu_custom_call.1} parent=1 // pred_check_branch
      %22 = sbr.rel (0) target = $region21
    $region20: #{tpu_custom_call.1} parent=1 // pred_region
      _
    $region21: #{tpu_custom_call.1} parent=1 // pred_fallthru
      _
    // Predicated region
    $region22: #{tpu_custom_call.1} parent=1 // pred_check
      _
    $region23: #{tpu_custom_call.1} parent=1 // pred_check_branch
      %24 = sbr.rel (0) target = $region25
    $region24: #{tpu_custom_call.1} parent=1 // pred_region
      _
    $region25: #{tpu_custom_call.1} parent=1 // pred_fallthru
      _
    // Predicated region
    $region26: #{tpu_custom_call.1} parent=1 // pred_check
      _
    $region27: #{tpu_custom_call.1} parent=1 // pred_check_branch
      %26 = sbr.rel (0) target = $region29
    $region28: #{tpu_custom_call.1} parent=1 // pred_region
      _
    $region29: #{tpu_custom_call.1} parent=1 // pred_fallthru
      _
    %v28 = vld [vmem:[%s0] sm:$0xff]
    %v29 = vld [vmem:[%s0 + $0x8] sm:$0xff]
    %v30 = vld [vmem:[%s0 + $0x10] sm:$0xff]
    %v31 = vld [vmem:[%s0 + $0x18] sm:$0xf]
    %v32 = vld [vmem:[%s0 + $0x1c] sm:$0xff]
    %v33 = vld [vmem:[%s0 + $0x24] sm:$0xff]
    %v34 = vld [vmem:[%s0 + $0x2c] sm:$0xff]
    %v35 = vld [vmem:[%s0 + $0x34] sm:$0xf]
    %v36 = vld [vmem:[%s0 + $0x38] sm:$0xff]
    %v37 = vld [vmem:[%s0 + $0x40] sm:$0xff]
    %v38 = vld [vmem:[%s0 + $0x48] sm:$0xff]
    %v39 = vld [vmem:[%s0 + $0x50] sm:$0xf]
    %v40 = vld [vmem:[%s0 + $0x54] sm:$0xff]
    %v41 = vld [vmem:[%s0 + $0x5c] sm:$0xff]
    %v42 = vld [vmem:[%s0 + $0x64] sm:$0xff]
    %v43 = vld [vmem:[%s0 + $0x6c] sm:$0xf]
    %v44 = vld [vmem:[%s0 + $0x70] sm:$0xff]
    %v45 = vld [vmem:[%s0 + $0x78] sm:$0xff]
    %v46 = vld [vmem:[%s0 + $0x80] sm:$0xff]
    %v47 = vld [vmem:[%s0 + $0x88] sm:$0xf]
    %v48 = vld [vmem:[%s0 + $0x8c] sm:$0xff]
    %v49 = vld [vmem:[%s0 + $0x94] sm:$0xff]
    %v50 = vld [vmem:[%s0 + $0x9c] sm:$0xff]
    %v51 = vld [vmem:[%s0 + $0xa4] sm:$0xf]
    %v52 = vld [vmem:[%s0 + $0xa8] sm:$0xff]
    %v53 = vld [vmem:[%s0 + $0xb0] sm:$0xff]
    %v54 = vld [vmem:[%s0 + $0xb8] sm:$0xff]
    %v55 = vld [vmem:[%s0 + $0xc0] sm:$0xf]
    %v56 = vld [vmem:[%s0 + $0xc4] sm:$0xff]
    %v57 = vld [vmem:[%s0 + $0xcc] sm:$0xff]
    %v58 = vld [vmem:[%s0 + $0xd4] sm:$0xff]
    %v59 = vld [vmem:[%s0 + $0xdc] sm:$0xf]
    %v60 = vld [vmem:[%s0 + $0xe0] sm:$0xff]
    %v61 = vld [vmem:[%s0 + $0xe8] sm:$0xff]
    %v62 = vld [vmem:[%s0 + $0xf0] sm:$0xff]
    %v63 = vld [vmem:[%s0 + $0xf8] sm:$0xf]
    %v64 = vld [vmem:[%s0 + $0xfc] sm:$0xff]
    %v65 = vld [vmem:[%s0 + $0x104] sm:$0xff]
    %v66 = vld [vmem:[%s0 + $0x10c] sm:$0xff]
    %v67 = vld [vmem:[%s0 + $0x114] sm:$0xf]
    %v68 = vld [vmem:[%s0 + $0x118] sm:$0xff]
    %v69 = vld [vmem:[%s0 + $0x120] sm:$0xff]
    %v70 = vld [vmem:[%s0 + $0x128] sm:$0xff]
    %v71 = vld [vmem:[%s0 + $0x130] sm:$0xf]
    %v72 = vld [vmem:[%s0 + $0x134] sm:$0xff]
    %v73 = vld [vmem:[%s0 + $0x13c] sm:$0xff]
    %v74 = vld [vmem:[%s0 + $0x144] sm:$0xff]
    %v75 = vld [vmem:[%s0 + $0x14c] sm:$0xf]
    %v76 = vld [vmem:[%s0 + $0x150] sm:$0xff]
    %v77 = vld [vmem:[%s0 + $0x158] sm:$0xff]
    %v78 = vld [vmem:[%s0 + $0x160] sm:$0xff]
    %v79 = vld [vmem:[%s0 + $0x168] sm:$0xf]
    %v80 = vld [vmem:[%s0 + $0x16c] sm:$0xff]
    %v81 = vld [vmem:[%s0 + $0x174] sm:$0xff]
    %v82 = vld [vmem:[%s0 + $0x17c] sm:$0xff]
    %v83 = vld [vmem:[%s0 + $0x184] sm:$0xf]
    %v84 = vld [vmem:[%s0 + $0x188] sm:$0xff]
    %v85 = vld [vmem:[%s0 + $0x190] sm:$0xff]
    %v86 = vld [vmem:[%s0 + $0x198] sm:$0xff]
    %v87 = vld [vmem:[%s0 + $0x1a0] sm:$0xf]
    %v88 = vld [vmem:[%s0 + $0x1a4] sm:$0xff]
    %v89 = vld [vmem:[%s0 + $0x1ac] sm:$0xff]
    %v90 = vld [vmem:[%s0 + $0x1b4] sm:$0xff]
    %v91 = vld [vmem:[%s0 + $0x1bc] sm:$0xf]
    %v92 = vld [vmem:[%s0 + $0x1c0] sm:$0xff]
    %v93 = vld [vmem:[%s0 + $0x1c8] sm:$0xff]
    %v94 = vld [vmem:[%s0 + $0x1d0] sm:$0xff]
    %v95 = vld [vmem:[%s0 + $0x1d8] sm:$0xf]
    %v96 = vld [vmem:[%s0 + $0x1dc] sm:$0xff]
    %v97 = vld [vmem:[%s0 + $0x1e4] sm:$0xff]
    %v98 = vld [vmem:[%s0 + $0x1ec] sm:$0xff]
    %v99 = vld [vmem:[%s0 + $0x1f4] sm:$0xf]
    %v100 = vld [vmem:[%s0 + $0x1f8] sm:$0xff]
    %v101 = vld [vmem:[%s0 + $0x200] sm:$0xff]
    %v102 = vld [vmem:[%s0 + $0x208] sm:$0xff]
    %v103 = vld [vmem:[%s0 + $0x210] sm:$0xf]
    %v104 = vld [vmem:[%s0 + $0x214] sm:$0xff]
    %v105 = vld [vmem:[%s0 + $0x21c] sm:$0xff]
    %v106 = vld [vmem:[%s0 + $0x224] sm:$0xff]
    %v107 = vld [vmem:[%s0 + $0x22c] sm:$0xf]
    %v108 = vld [vmem:[%s0 + $0x230] sm:$0xff]
    %v109 = vld [vmem:[%s0 + $0x238] sm:$0xff]
    %v110 = vld [vmem:[%s0 + $0x240] sm:$0xff]
    %v111 = vld [vmem:[%s0 + $0x248] sm:$0xf]
    %v112 = vld [vmem:[%s0 + $0x24c] sm:$0xff]
    %v113 = vld [vmem:[%s0 + $0x254] sm:$0xff]
    %v114 = vld [vmem:[%s0 + $0x25c] sm:$0xff]
    %v115 = vld [vmem:[%s0 + $0x264] sm:$0xf]
    %v116 = vld [vmem:[%s0 + $0x268] sm:$0xff]
    %v117 = vld [vmem:[%s0 + $0x270] sm:$0xff]
    %v118 = vld [vmem:[%s0 + $0x278] sm:$0xff]
    %v119 = vld [vmem:[%s0 + $0x280] sm:$0xf]
    %v120 = vld [vmem:[%s0 + $0x284] sm:$0xff]
    %v121 = vld [vmem:[%s0 + $0x28c] sm:$0xff]
    %v122 = vld [vmem:[%s0 + $0x294] sm:$0xff]
    %v123 = vld [vmem:[%s0 + $0x29c] sm:$0xf]
    %v124 = vld [vmem:[%s0 + $0x2a0] sm:$0xff]
    %v125 = vld [vmem:[%s0 + $0x2a8] sm:$0xff]
    %v126 = vld [vmem:[%s0 + $0x2b0] sm:$0xff]
    %v127 = vld [vmem:[%s0 + $0x2b8] sm:$0xf]
    %v128 = vld [vmem:[%s0 + $0x2bc] sm:$0xff]
    %v129 = vld [vmem:[%s0 + $0x2c4] sm:$0xff]
    %v130 = vld [vmem:[%s0 + $0x2cc] sm:$0xff]
    %v131 = vld [vmem:[%s0 + $0x2d4] sm:$0xf]
    %v132 = vld [vmem:[%s0 + $0x2d8] sm:$0xff]
    %v133 = vld [vmem:[%s0 + $0x2e0] sm:$0xff]
    %v134 = vld [vmem:[%s0 + $0x2e8] sm:$0xff]
    %v135 = vld [vmem:[%s0 + $0x2f0] sm:$0xf]
    %v136 = vld [vmem:[%s0 + $0x2f4] sm:$0xff]
    %v137 = vld [vmem:[%s0 + $0x2fc] sm:$0xff]
    %v138 = vld [vmem:[%s0 + $0x304] sm:$0xff]
    %v139 = vld [vmem:[%s0 + $0x30c] sm:$0xf]
    %v140 = vld [vmem:[%s0 + $0x310] sm:$0xff]
    %v141 = vld [vmem:[%s0 + $0x318] sm:$0xff]
    %v142 = vld [vmem:[%s0 + $0x320] sm:$0xff]
    %v143 = vld [vmem:[%s0 + $0x328] sm:$0xf]
    %v144 = vld [vmem:[%s0 + $0x32c] sm:$0xff]
    %v145 = vld [vmem:[%s0 + $0x334] sm:$0xff]
    %v146 = vld [vmem:[%s0 + $0x33c] sm:$0xff]
    %v147 = vld [vmem:[%s0 + $0x344] sm:$0xf]
    %v148 = vld [vmem:[%s0 + $0x348] sm:$0xff]
    %v149 = vld [vmem:[%s0 + $0x350] sm:$0xff]
    %v150 = vld [vmem:[%s0 + $0x358] sm:$0xff]
    %v151 = vld [vmem:[%s0 + $0x360] sm:$0xf]
    %v152 = vld [vmem:[%s0 + $0x364] sm:$0xff]
    %v153 = vld [vmem:[%s0 + $0x36c] sm:$0xff]
    %v154 = vld [vmem:[%s0 + $0x374] sm:$0xff]
    %v155 = vld [vmem:[%s0 + $0x37c] sm:$0xf]
    %v156 = vld [vmem:[%s1] sm:$0xf]
    %v157 = vld [vmem:[%s1 + $0x4] sm:$0xf]
    %v158 = vld [vmem:[%s1 + $0x8] sm:$0xf]
    %v159 = vld [vmem:[%s1 + $0xc] sm:$0xf]
    %v160 = vld [vmem:[%s1 + $0x10] sm:$0xf]
    %v161 = vld [vmem:[%s1 + $0x14] sm:$0xf]
    %v162 = vld [vmem:[%s1 + $0x18] sm:$0xf]
    %v163 = vld [vmem:[%s1 + $0x1c] sm:$0xf]
    %v164 = vld [vmem:[%s1 + $0x20] sm:$0xf]
    %v165 = vld [vmem:[%s1 + $0x24] sm:$0xf]
    %v166 = vld [vmem:[%s1 + $0x28] sm:$0xf]
    %v167 = vld [vmem:[%s1 + $0x2c] sm:$0xf]
    %v168 = vld [vmem:[%s1 + $0x30] sm:$0xf]
    %v169 = vld [vmem:[%s1 + $0x34] sm:$0xf]
    %v170 = vld [vmem:[%s1 + $0x38] sm:$0xf]
    %v171 = vld [vmem:[%s1 + $0x3c] sm:$0xf]
    %v172 = vld [vmem:[%s1 + $0x40] sm:$0xf]
    %v173 = vld [vmem:[%s1 + $0x44] sm:$0xf]
    %v174 = vld [vmem:[%s1 + $0x48] sm:$0xf]
    %v175 = vld [vmem:[%s1 + $0x4c] sm:$0xf]
    %v176 = vld [vmem:[%s1 + $0x50] sm:$0xf]
    %v177 = vld [vmem:[%s1 + $0x54] sm:$0xf]
    %v178 = vld [vmem:[%s1 + $0x58] sm:$0xf]
    %v179 = vld [vmem:[%s1 + $0x5c] sm:$0xf]
    %v180 = vld [vmem:[%s1 + $0x60] sm:$0xf]
    %v181 = vld [vmem:[%s1 + $0x64] sm:$0xf]
    %v182 = vld [vmem:[%s1 + $0x68] sm:$0xf]
    %v183 = vld [vmem:[%s1 + $0x6c] sm:$0xf]
    %v184 = vld [vmem:[%s1 + $0x70] sm:$0xf]
    %v185 = vld [vmem:[%s1 + $0x74] sm:$0xf]
    %v186 = vld [vmem:[%s1 + $0x78] sm:$0xf]
    %v187 = vld [vmem:[%s1 + $0x7c] sm:$0xf]
    %v188 = vld [vmem:[%s1 + $0x80] sm:$0xf]
    %v189 = vld [vmem:[%s1 + $0x84] sm:$0xf]
    %v190 = vld [vmem:[%s1 + $0x88] sm:$0xf]
    %v191 = vld [vmem:[%s1 + $0x8c] sm:$0xf]
    %v192 = vld [vmem:[%s1 + $0x90] sm:$0xf]
    %v193 = vld [vmem:[%s1 + $0x94] sm:$0xf]
    %v194 = vld [vmem:[%s1 + $0x98] sm:$0xf]
    %v195 = vld [vmem:[%s1 + $0x9c] sm:$0xf]
    %v196 = vld [vmem:[%s1 + $0xa0] sm:$0xf]
    %v197 = vld [vmem:[%s1 + $0xa4] sm:$0xf]
    %v198 = vld [vmem:[%s1 + $0xa8] sm:$0xf]
    %v199 = vld [vmem:[%s1 + $0xac] sm:$0xf]
    %v200 = vld [vmem:[%s1 + $0xb0] sm:$0xf]
    %v201 = vld [vmem:[%s1 + $0xb4] sm:$0xf]
    %v202 = vld [vmem:[%s1 + $0xb8] sm:$0xf]
    %v203 = vld [vmem:[%s1 + $0xbc] sm:$0xf]
    %v204 = vld [vmem:[%s1 + $0xc0] sm:$0xf]
    %v205 = vld [vmem:[%s1 + $0xc4] sm:$0xf]
    %v206 = vld [vmem:[%s1 + $0xc8] sm:$0xf]
    %v207 = vld [vmem:[%s1 + $0xcc] sm:$0xf]
    %v208 = vld [vmem:[%s1 + $0xd0] sm:$0xf]
    %v209 = vld [vmem:[%s1 + $0xd4] sm:$0xf]
    %v210 = vld [vmem:[%s1 + $0xd8] sm:$0xf]
    %v211 = vld [vmem:[%s1 + $0xdc] sm:$0xf]
    %v212 = vld [vmem:[%s1 + $0xe0] sm:$0xf]
    %v213 = vld [vmem:[%s1 + $0xe4] sm:$0xf]
    %v214 = vld [vmem:[%s1 + $0xe8] sm:$0xf]
    %v215 = vld [vmem:[%s1 + $0xec] sm:$0xf]
    %v216 = vld [vmem:[%s1 + $0xf0] sm:$0xf]
    %v217 = vld [vmem:[%s1 + $0xf4] sm:$0xf]
    %v218 = vld [vmem:[%s1 + $0xf8] sm:$0xf]
    %v219 = vld [vmem:[%s1 + $0xfc] sm:$0xf]
    %v220 = vld [vmem:[%s1 + $0x100] sm:$0xf]
    %v221 = vld [vmem:[%s1 + $0x104] sm:$0xf]
    %v222 = vld [vmem:[%s1 + $0x108] sm:$0xf]
    %v223 = vld [vmem:[%s1 + $0x10c] sm:$0xf]
    %v224 = vld [vmem:[%s1 + $0x110] sm:$0xf]
    %v225 = vld [vmem:[%s1 + $0x114] sm:$0xf]
    %v226 = vld [vmem:[%s1 + $0x118] sm:$0xf]
    %v227 = vld [vmem:[%s1 + $0x11c] sm:$0xf]
    %v228 = vld [vmem:[%s1 + $0x120] sm:$0xf]
    %v229 = vld [vmem:[%s1 + $0x124] sm:$0xf]
    %v230 = vld [vmem:[%s1 + $0x128] sm:$0xf]
    %v231 = vld [vmem:[%s1 + $0x12c] sm:$0xf]
    %v232 = vld [vmem:[%s1 + $0x130] sm:$0xf]
    %v233 = vld [vmem:[%s1 + $0x134] sm:$0xf]
    %v234 = vld [vmem:[%s1 + $0x138] sm:$0xf]
    %v235 = vld [vmem:[%s1 + $0x13c] sm:$0xf]
    %v236 = vld [vmem:[%s1 + $0x140] sm:$0xf]
    %v237 = vld [vmem:[%s1 + $0x144] sm:$0xf]
    %v238 = vld [vmem:[%s1 + $0x148] sm:$0xf]
    %v239 = vld [vmem:[%s1 + $0x14c] sm:$0xf]
    %v240 = vld [vmem:[%s1 + $0x150] sm:$0xf]
    %v241 = vld [vmem:[%s1 + $0x154] sm:$0xf]
    %v242 = vld [vmem:[%s1 + $0x158] sm:$0xf]
    %v243 = vld [vmem:[%s1 + $0x15c] sm:$0xf]
    %v244 = vld [vmem:[%s1 + $0x160] sm:$0xf]
    %v245 = vld [vmem:[%s1 + $0x164] sm:$0xf]
    %v246 = vld [vmem:[%s1 + $0x168] sm:$0xf]
    %v247 = vld [vmem:[%s1 + $0x16c] sm:$0xf]
    %v248 = vld [vmem:[%s1 + $0x170] sm:$0xf]
    %v249 = vld [vmem:[%s1 + $0x174] sm:$0xf]
    %v250 = vld [vmem:[%s1 + $0x178] sm:$0xf]
    %v251 = vld [vmem:[%s1 + $0x17c] sm:$0xf]
    %v252 = vld [vmem:[%s1 + $0x180] sm:$0xf]
    %v253 = vld [vmem:[%s1 + $0x184] sm:$0xf]
    %v254 = vld [vmem:[%s2] sm:$0x1]
    %v256 = vlaneseq
    %v257 = vshrl.u32 %v256, 7
    %v258 = vsub.s32 0, %v257
    %v259 = vrot.slane %v254, %v258
    %v389 = vunpack.c.l.b16 %v28
    %v390 = vunpack.c.h.b16 %v28
    %v391 = vunpack.c.l.b16 %v29
    %v392 = vunpack.c.h.b16 %v29
    %v393 = vunpack.c.l.b16 %v30
    %v394 = vunpack.c.h.b16 %v30
    %v395 = vunpack.c.l.b16 %v31
    %v396 = vunpack.c.l.b16 %v32
    %v397 = vunpack.c.h.b16 %v32
    %v398 = vunpack.c.l.b16 %v33
    %v399 = vunpack.c.h.b16 %v33
    %v400 = vunpack.c.l.b16 %v34
    %v401 = vunpack.c.h.b16 %v34
    %v402 = vunpack.c.l.b16 %v35
    %v403 = vunpack.c.l.b16 %v36
    %v404 = vunpack.c.h.b16 %v36
    %v405 = vunpack.c.l.b16 %v37
    %v406 = vunpack.c.h.b16 %v37
    %v407 = vunpack.c.l.b16 %v38
    %v408 = vunpack.c.h.b16 %v38
    %v409 = vunpack.c.l.b16 %v39
    %v410 = vunpack.c.l.b16 %v40
    %v411 = vunpack.c.h.b16 %v40
    %v412 = vunpack.c.l.b16 %v41
    %v413 = vunpack.c.h.b16 %v41
    %v414 = vunpack.c.l.b16 %v42
    %v415 = vunpack.c.h.b16 %v42
    %v416 = vunpack.c.l.b16 %v43
    %v417 = vunpack.c.l.b16 %v44
    %v418 = vunpack.c.h.b16 %v44
    %v419 = vunpack.c.l.b16 %v45
    %v420 = vunpack.c.h.b16 %v45
    %v421 = vunpack.c.l.b16 %v46
    %v422 = vunpack.c.h.b16 %v46
    %v423 = vunpack.c.l.b16 %v47
    %v424 = vunpack.c.l.b16 %v48
    %v425 = vunpack.c.h.b16 %v48
    %v426 = vunpack.c.l.b16 %v49
    %v427 = vunpack.c.h.b16 %v49
    %v428 = vunpack.c.l.b16 %v50
    %v429 = vunpack.c.h.b16 %v50
    %v430 = vunpack.c.l.b16 %v51
    %v431 = vunpack.c.l.b16 %v52
    %v432 = vunpack.c.h.b16 %v52
    %v433 = vunpack.c.l.b16 %v53
    %v434 = vunpack.c.h.b16 %v53
    %v435 = vunpack.c.l.b16 %v54
    %v436 = vunpack.c.h.b16 %v54
    %v437 = vunpack.c.l.b16 %v55
    %v438 = vunpack.c.l.b16 %v56
    %v439 = vunpack.c.h.b16 %v56
    %v440 = vunpack.c.l.b16 %v57
    %v441 = vunpack.c.h.b16 %v57
    %v442 = vunpack.c.l.b16 %v58
    %v443 = vunpack.c.h.b16 %v58
    %v444 = vunpack.c.l.b16 %v59
    %v445 = vunpack.c.l.b16 %v60
    %v446 = vunpack.c.h.b16 %v60
    %v447 = vunpack.c.l.b16 %v61
    %v448 = vunpack.c.h.b16 %v61
    %v449 = vunpack.c.l.b16 %v62
    %v450 = vunpack.c.h.b16 %v62
    %v451 = vunpack.c.l.b16 %v63
    %v452 = vunpack.c.l.b16 %v64
    %v453 = vunpack.c.h.b16 %v64
    %v454 = vunpack.c.l.b16 %v65
    %v455 = vunpack.c.h.b16 %v65
    %v456 = vunpack.c.l.b16 %v66
    %v457 = vunpack.c.h.b16 %v66
    %v458 = vunpack.c.l.b16 %v67
    %v459 = vunpack.c.l.b16 %v68
    %v460 = vunpack.c.h.b16 %v68
    %v461 = vunpack.c.l.b16 %v69
    %v462 = vunpack.c.h.b16 %v69
    %v463 = vunpack.c.l.b16 %v70
    %v464 = vunpack.c.h.b16 %v70
    %v465 = vunpack.c.l.b16 %v71
    %v466 = vunpack.c.l.b16 %v72
    %v467 = vunpack.c.h.b16 %v72
    %v468 = vunpack.c.l.b16 %v73
    %v469 = vunpack.c.h.b16 %v73
    %v470 = vunpack.c.l.b16 %v74
    %v471 = vunpack.c.h.b16 %v74
    %v472 = vunpack.c.l.b16 %v75
    %v473 = vunpack.c.l.b16 %v76
    %v474 = vunpack.c.h.b16 %v76
    %v475 = vunpack.c.l.b16 %v77
    %v476 = vunpack.c.h.b16 %v77
    %v477 = vunpack.c.l.b16 %v78
    %v478 = vunpack.c.h.b16 %v78
    %v479 = vunpack.c.l.b16 %v79
    %v480 = vunpack.c.l.b16 %v80
    %v481 = vunpack.c.h.b16 %v80
    %v482 = vunpack.c.l.b16 %v81
    %v483 = vunpack.c.h.b16 %v81
    %v484 = vunpack.c.l.b16 %v82
    %v485 = vunpack.c.h.b16 %v82
    %v486 = vunpack.c.l.b16 %v83
    %v487 = vunpack.c.l.b16 %v84
    %v488 = vunpack.c.h.b16 %v84
    %v489 = vunpack.c.l.b16 %v85
    %v490 = vunpack.c.h.b16 %v85
    %v491 = vunpack.c.l.b16 %v86
    %v492 = vunpack.c.h.b16 %v86
    %v493 = vunpack.c.l.b16 %v87
    %v494 = vunpack.c.l.b16 %v88
    %v495 = vunpack.c.h.b16 %v88
    %v496 = vunpack.c.l.b16 %v89
    %v497 = vunpack.c.h.b16 %v89
    %v498 = vunpack.c.l.b16 %v90
    %v499 = vunpack.c.h.b16 %v90
    %v500 = vunpack.c.l.b16 %v91
    %v501 = vunpack.c.l.b16 %v92
    %v502 = vunpack.c.h.b16 %v92
    %v503 = vunpack.c.l.b16 %v93
    %v504 = vunpack.c.h.b16 %v93
    %v505 = vunpack.c.l.b16 %v94
    %v506 = vunpack.c.h.b16 %v94
    %v507 = vunpack.c.l.b16 %v95
    %v508 = vunpack.c.l.b16 %v96
    %v509 = vunpack.c.h.b16 %v96
    %v510 = vunpack.c.l.b16 %v97
    %v511 = vunpack.c.h.b16 %v97
    %v512 = vunpack.c.l.b16 %v98
    %v513 = vunpack.c.h.b16 %v98
    %v514 = vunpack.c.l.b16 %v99
    %v515 = vunpack.c.l.b16 %v100
    %v516 = vunpack.c.h.b16 %v100
    %v517 = vunpack.c.l.b16 %v101
    %v518 = vunpack.c.h.b16 %v101
    %v519 = vunpack.c.l.b16 %v102
    %v520 = vunpack.c.h.b16 %v102
    %v521 = vunpack.c.l.b16 %v103
    %v522 = vunpack.c.l.b16 %v104
    %v523 = vunpack.c.h.b16 %v104
    %v524 = vunpack.c.l.b16 %v105
    %v525 = vunpack.c.h.b16 %v105
    %v526 = vunpack.c.l.b16 %v106
    %v527 = vunpack.c.h.b16 %v106
    %v528 = vunpack.c.l.b16 %v107
    %v529 = vunpack.c.l.b16 %v108
    %v530 = vunpack.c.h.b16 %v108
    %v531 = vunpack.c.l.b16 %v109
    %v532 = vunpack.c.h.b16 %v109
    %v533 = vunpack.c.l.b16 %v110
    %v534 = vunpack.c.h.b16 %v110
    %v535 = vunpack.c.l.b16 %v111
    %v536 = vunpack.c.l.b16 %v112
    %v537 = vunpack.c.h.b16 %v112
    %v538 = vunpack.c.l.b16 %v113
    %v539 = vunpack.c.h.b16 %v113
    %v540 = vunpack.c.l.b16 %v114
    %v541 = vunpack.c.h.b16 %v114
    %v542 = vunpack.c.l.b16 %v115
    %v543 = vunpack.c.l.b16 %v116
    %v544 = vunpack.c.h.b16 %v116
    %v545 = vunpack.c.l.b16 %v117
    %v546 = vunpack.c.h.b16 %v117
    %v547 = vunpack.c.l.b16 %v118
    %v548 = vunpack.c.h.b16 %v118
    %v549 = vunpack.c.l.b16 %v119
    %v550 = vunpack.c.l.b16 %v120
    %v551 = vunpack.c.h.b16 %v120
    %v552 = vunpack.c.l.b16 %v121
    %v553 = vunpack.c.h.b16 %v121
    %v554 = vunpack.c.l.b16 %v122
    %v555 = vunpack.c.h.b16 %v122
    %v556 = vunpack.c.l.b16 %v123
    %v557 = vunpack.c.l.b16 %v124
    %v558 = vunpack.c.h.b16 %v124
    %v559 = vunpack.c.l.b16 %v125
    %v560 = vunpack.c.h.b16 %v125
    %v561 = vunpack.c.l.b16 %v126
    %v562 = vunpack.c.h.b16 %v126
    %v563 = vunpack.c.l.b16 %v127
    %v564 = vunpack.c.l.b16 %v128
    %v565 = vunpack.c.h.b16 %v128
    %v566 = vunpack.c.l.b16 %v129
    %v567 = vunpack.c.h.b16 %v129
    %v568 = vunpack.c.l.b16 %v130
    %v569 = vunpack.c.h.b16 %v130
    %v570 = vunpack.c.l.b16 %v131
    %v571 = vunpack.c.l.b16 %v132
    %v572 = vunpack.c.h.b16 %v132
    %v573 = vunpack.c.l.b16 %v133
    %v574 = vunpack.c.h.b16 %v133
    %v575 = vunpack.c.l.b16 %v134
    %v576 = vunpack.c.h.b16 %v134
    %v577 = vunpack.c.l.b16 %v135
    %v578 = vunpack.c.l.b16 %v136
    %v579 = vunpack.c.h.b16 %v136
    %v580 = vunpack.c.l.b16 %v137
    %v581 = vunpack.c.h.b16 %v137
    %v582 = vunpack.c.l.b16 %v138
    %v583 = vunpack.c.h.b16 %v138
    %v584 = vunpack.c.l.b16 %v139
    %v585 = vunpack.c.l.b16 %v140
    %v586 = vunpack.c.h.b16 %v140
    %v587 = vunpack.c.l.b16 %v141
    %v588 = vunpack.c.h.b16 %v141
    %v589 = vunpack.c.l.b16 %v142
    %v590 = vunpack.c.h.b16 %v142
    %v591 = vunpack.c.l.b16 %v143
    %v592 = vunpack.c.l.b16 %v144
    %v593 = vunpack.c.h.b16 %v144
    %v594 = vunpack.c.l.b16 %v145
    %v595 = vunpack.c.h.b16 %v145
    %v596 = vunpack.c.l.b16 %v146
    %v597 = vunpack.c.h.b16 %v146
    %v598 = vunpack.c.l.b16 %v147
    %v599 = vunpack.c.l.b16 %v148
    %v600 = vunpack.c.h.b16 %v148
    %v601 = vunpack.c.l.b16 %v149
    %v602 = vunpack.c.h.b16 %v149
    %v603 = vunpack.c.l.b16 %v150
    %v604 = vunpack.c.h.b16 %v150
    %v605 = vunpack.c.l.b16 %v151
    %v606 = vunpack.c.l.b16 %v152
    %v607 = vunpack.c.h.b16 %v152
    %v608 = vunpack.c.l.b16 %v153
    %v609 = vunpack.c.h.b16 %v153
    %v610 = vunpack.c.l.b16 %v154
    %v611 = vunpack.c.h.b16 %v154
    %v612 = vunpack.c.l.b16 %v155
    %v613 = vpack.c.b16 %v396, %v389
    %v614 = vpack.c.b16 %v397, %v390
    %v615 = vpack.c.b16 %v398, %v391
    %v616 = vpack.c.b16 %v399, %v392
    %v617 = vpack.c.b16 %v400, %v393
    %v618 = vpack.c.b16 %v401, %v394
    %v619 = vpack.c.b16 %v402, %v395
    %v620 = vpack.c.b16 %v410, %v403
    %v621 = vpack.c.b16 %v411, %v404
    %v622 = vpack.c.b16 %v412, %v405
    %v623 = vpack.c.b16 %v413, %v406
    %v624 = vpack.c.b16 %v414, %v407
    %v625 = vpack.c.b16 %v415, %v408
    %v626 = vpack.c.b16 %v416, %v409
    %v627 = vpack.c.b16 %v424, %v417
    %v628 = vpack.c.b16 %v425, %v418
    %v629 = vpack.c.b16 %v426, %v419
    %v630 = vpack.c.b16 %v427, %v420
    %v631 = vpack.c.b16 %v428, %v421
    %v632 = vpack.c.b16 %v429, %v422
    %v633 = vpack.c.b16 %v430, %v423
    %v634 = vpack.c.b16 %v438, %v431
    %v635 = vpack.c.b16 %v439, %v432
    %v636 = vpack.c.b16 %v440, %v433
    %v637 = vpack.c.b16 %v441, %v434
    %v638 = vpack.c.b16 %v442, %v435
    %v639 = vpack.c.b16 %v443, %v436
    %v640 = vpack.c.b16 %v444, %v437
    %v641 = vpack.c.b16 %v452, %v445
    %v642 = vpack.c.b16 %v453, %v446
    %v643 = vpack.c.b16 %v454, %v447
    %v644 = vpack.c.b16 %v455, %v448
    %v645 = vpack.c.b16 %v456, %v449
    %v646 = vpack.c.b16 %v457, %v450
    %v647 = vpack.c.b16 %v458, %v451
    %v648 = vpack.c.b16 %v466, %v459
    %v649 = vpack.c.b16 %v467, %v460
    %v650 = vpack.c.b16 %v468, %v461
    %v651 = vpack.c.b16 %v469, %v462
    %v652 = vpack.c.b16 %v470, %v463
    %v653 = vpack.c.b16 %v471, %v464
    %v654 = vpack.c.b16 %v472, %v465
    %v655 = vpack.c.b16 %v480, %v473
    %v656 = vpack.c.b16 %v481, %v474
    %v657 = vpack.c.b16 %v482, %v475
    %v658 = vpack.c.b16 %v483, %v476
    %v659 = vpack.c.b16 %v484, %v477
    %v660 = vpack.c.b16 %v485, %v478
    %v661 = vpack.c.b16 %v486, %v479
    %v662 = vpack.c.b16 %v494, %v487
    %v663 = vpack.c.b16 %v495, %v488
    %v664 = vpack.c.b16 %v496, %v489
    %v665 = vpack.c.b16 %v497, %v490
    %v666 = vpack.c.b16 %v498, %v491
    %v667 = vpack.c.b16 %v499, %v492
    %v668 = vpack.c.b16 %v500, %v493
    %v669 = vpack.c.b16 %v508, %v501
    %v670 = vpack.c.b16 %v509, %v502
    %v671 = vpack.c.b16 %v510, %v503
    %v672 = vpack.c.b16 %v511, %v504
    %v673 = vpack.c.b16 %v512, %v505
    %v674 = vpack.c.b16 %v513, %v506
    %v675 = vpack.c.b16 %v514, %v507
    %v676 = vpack.c.b16 %v522, %v515
    %v677 = vpack.c.b16 %v523, %v516
    %v678 = vpack.c.b16 %v524, %v517
    %v679 = vpack.c.b16 %v525, %v518
    %v680 = vpack.c.b16 %v526, %v519
    %v681 = vpack.c.b16 %v527, %v520
    %v682 = vpack.c.b16 %v528, %v521
    %v683 = vpack.c.b16 %v536, %v529
    %v684 = vpack.c.b16 %v537, %v530
    %v685 = vpack.c.b16 %v538, %v531
    %v686 = vpack.c.b16 %v539, %v532
    %v687 = vpack.c.b16 %v540, %v533
    %v688 = vpack.c.b16 %v541, %v534
    %v689 = vpack.c.b16 %v542, %v535
    %v690 = vpack.c.b16 %v550, %v543
    %v691 = vpack.c.b16 %v551, %v544
    %v692 = vpack.c.b16 %v552, %v545
    %v693 = vpack.c.b16 %v553, %v546
    %v694 = vpack.c.b16 %v554, %v547
    %v695 = vpack.c.b16 %v555, %v548
    %v696 = vpack.c.b16 %v556, %v549
    %v697 = vpack.c.b16 %v564, %v557
    %v698 = vpack.c.b16 %v565, %v558
    %v699 = vpack.c.b16 %v566, %v559
    %v700 = vpack.c.b16 %v567, %v560
    %v701 = vpack.c.b16 %v568, %v561
    %v702 = vpack.c.b16 %v569, %v562
    %v703 = vpack.c.b16 %v570, %v563
    %v704 = vpack.c.b16 %v578, %v571
    %v705 = vpack.c.b16 %v579, %v572
    %v706 = vpack.c.b16 %v580, %v573
    %v707 = vpack.c.b16 %v581, %v574
    %v708 = vpack.c.b16 %v582, %v575
    %v709 = vpack.c.b16 %v583, %v576
    %v710 = vpack.c.b16 %v584, %v577
    %v711 = vpack.c.b16 %v592, %v585
    %v712 = vpack.c.b16 %v593, %v586
    %v713 = vpack.c.b16 %v594, %v587
    %v714 = vpack.c.b16 %v595, %v588
    %v715 = vpack.c.b16 %v596, %v589
    %v716 = vpack.c.b16 %v597, %v590
    %v717 = vpack.c.b16 %v598, %v591
    %v718 = vpack.c.b16 %v606, %v599
    %v719 = vpack.c.b16 %v607, %v600
    %v720 = vpack.c.b16 %v608, %v601
    %v721 = vpack.c.b16 %v609, %v602
    %v722 = vpack.c.b16 %v610, %v603
    %v723 = vpack.c.b16 %v611, %v604
    %v724 = vpack.c.b16 %v612, %v605
    %v919 = vunpack.c.l.b16 %v156
    %v920 = vunpack.c.l.b16 %v157
    %v921 = vunpack.c.l.b16 %v158
    %v922 = vunpack.c.l.b16 %v159
    %v923 = vunpack.c.l.b16 %v160
    %v924 = vunpack.c.l.b16 %v161
    %v925 = vunpack.c.l.b16 %v162
    %v926 = vunpack.c.l.b16 %v163
    %v927 = vunpack.c.l.b16 %v164
    %v928 = vunpack.c.l.b16 %v165
    %v929 = vunpack.c.l.b16 %v166
    %v930 = vunpack.c.l.b16 %v167
    %v931 = vunpack.c.l.b16 %v168
    %v932 = vunpack.c.l.b16 %v169
    %v933 = vunpack.c.l.b16 %v170
    %v934 = vunpack.c.l.b16 %v171
    %v935 = vunpack.c.l.b16 %v172
    %v936 = vunpack.c.l.b16 %v173
    %v937 = vunpack.c.l.b16 %v174
    %v938 = vunpack.c.l.b16 %v175
    %v939 = vunpack.c.l.b16 %v176
    %v940 = vunpack.c.l.b16 %v177
    %v941 = vunpack.c.l.b16 %v178
    %v942 = vunpack.c.l.b16 %v179
    %v943 = vunpack.c.l.b16 %v180
    %v944 = vunpack.c.l.b16 %v181
    %v945 = vunpack.c.l.b16 %v182
    %v946 = vunpack.c.l.b16 %v183
    %v947 = vunpack.c.l.b16 %v184
    %v948 = vunpack.c.l.b16 %v185
    %v949 = vunpack.c.l.b16 %v186
    %v950 = vunpack.c.l.b16 %v187
    %v951 = vunpack.c.l.b16 %v188
    %v952 = vunpack.c.l.b16 %v189
    %v953 = vunpack.c.l.b16 %v190
    %v954 = vunpack.c.l.b16 %v191
    %v955 = vunpack.c.l.b16 %v192
    %v956 = vunpack.c.l.b16 %v193
    %v957 = vunpack.c.l.b16 %v194
    %v958 = vunpack.c.l.b16 %v195
    %v959 = vunpack.c.l.b16 %v196
    %v960 = vunpack.c.l.b16 %v197
    %v961 = vunpack.c.l.b16 %v198
    %v962 = vunpack.c.l.b16 %v199
    %v963 = vunpack.c.l.b16 %v200
    %v964 = vunpack.c.l.b16 %v201
    %v965 = vunpack.c.l.b16 %v202
    %v966 = vunpack.c.l.b16 %v203
    %v967 = vunpack.c.l.b16 %v204
    %v968 = vunpack.c.l.b16 %v205
    %v969 = vunpack.c.l.b16 %v206
    %v970 = vunpack.c.l.b16 %v207
    %v971 = vunpack.c.l.b16 %v208
    %v972 = vunpack.c.l.b16 %v209
    %v973 = vunpack.c.l.b16 %v210
    %v974 = vunpack.c.l.b16 %v211
    %v975 = vunpack.c.l.b16 %v212
    %v976 = vunpack.c.l.b16 %v213
    %v977 = vunpack.c.l.b16 %v214
    %v978 = vunpack.c.l.b16 %v215
    %v979 = vunpack.c.l.b16 %v216
    %v980 = vunpack.c.l.b16 %v217
    %v981 = vunpack.c.l.b16 %v218
    %v982 = vunpack.c.l.b16 %v219
    %v983 = vunpack.c.l.b16 %v220
    %v984 = vunpack.c.l.b16 %v221
    %v985 = vunpack.c.l.b16 %v222
    %v986 = vunpack.c.l.b16 %v223
    %v987 = vunpack.c.l.b16 %v224
    %v988 = vunpack.c.l.b16 %v225
    %v989 = vunpack.c.l.b16 %v226
    %v990 = vunpack.c.l.b16 %v227
    %v991 = vunpack.c.l.b16 %v228
    %v992 = vunpack.c.l.b16 %v229
    %v993 = vunpack.c.l.b16 %v230
    %v994 = vunpack.c.l.b16 %v231
    %v995 = vunpack.c.l.b16 %v232
    %v996 = vunpack.c.l.b16 %v233
    %v997 = vunpack.c.l.b16 %v234
    %v998 = vunpack.c.l.b16 %v235
    %v999 = vunpack.c.l.b16 %v236
    %v1000 = vunpack.c.l.b16 %v237
    %v1001 = vunpack.c.l.b16 %v238
    %v1002 = vunpack.c.l.b16 %v239
    %v1003 = vunpack.c.l.b16 %v240
    %v1004 = vunpack.c.l.b16 %v241
    %v1005 = vunpack.c.l.b16 %v242
    %v1006 = vunpack.c.l.b16 %v243
    %v1007 = vunpack.c.l.b16 %v244
    %v1008 = vunpack.c.l.b16 %v245
    %v1009 = vunpack.c.l.b16 %v246
    %v1010 = vunpack.c.l.b16 %v247
    %v1011 = vunpack.c.l.b16 %v248
    %v1012 = vunpack.c.l.b16 %v249
    %v1013 = vunpack.c.l.b16 %v250
    %v1014 = vunpack.c.l.b16 %v251
    %v1015 = vunpack.c.l.b16 %v252
    %v1016 = vunpack.c.l.b16 %v253
    %v1017 = vpack.c.b16 %v920, %v919
    %v1018 = vpack.c.b16 %v922, %v921
    %v1019 = vpack.c.b16 %v924, %v923
    %v1020 = vpack.c.b16 %v926, %v925
    %v1021 = vpack.c.b16 %v928, %v927
    %v1022 = vpack.c.b16 %v930, %v929
    %v1023 = vpack.c.b16 %v932, %v931
    %v1024 = vpack.c.b16 %v934, %v933
    %v1025 = vpack.c.b16 %v936, %v935
    %v1026 = vpack.c.b16 %v938, %v937
    %v1027 = vpack.c.b16 %v940, %v939
    %v1028 = vpack.c.b16 %v942, %v941
    %v1029 = vpack.c.b16 %v944, %v943
    %v1030 = vpack.c.b16 %v946, %v945
    %v1031 = vpack.c.b16 %v948, %v947
    %v1032 = vpack.c.b16 %v950, %v949
    %v1033 = vpack.c.b16 %v952, %v951
    %v1034 = vpack.c.b16 %v954, %v953
    %v1035 = vpack.c.b16 %v956, %v955
    %v1036 = vpack.c.b16 %v958, %v957
    %v1037 = vpack.c.b16 %v960, %v959
    %v1038 = vpack.c.b16 %v962, %v961
    %v1039 = vpack.c.b16 %v964, %v963
    %v1040 = vpack.c.b16 %v966, %v965
    %v1041 = vpack.c.b16 %v968, %v967
    %v1042 = vpack.c.b16 %v970, %v969
    %v1043 = vpack.c.b16 %v972, %v971
    %v1044 = vpack.c.b16 %v974, %v973
    %v1045 = vpack.c.b16 %v976, %v975
    %v1046 = vpack.c.b16 %v978, %v977
    %v1047 = vpack.c.b16 %v980, %v979
    %v1048 = vpack.c.b16 %v982, %v981
    %v1049 = vpack.c.b16 %v984, %v983
    %v1050 = vpack.c.b16 %v986, %v985
    %v1051 = vpack.c.b16 %v988, %v987
    %v1052 = vpack.c.b16 %v990, %v989
    %v1053 = vpack.c.b16 %v992, %v991
    %v1054 = vpack.c.b16 %v994, %v993
    %v1055 = vpack.c.b16 %v996, %v995
    %v1056 = vpack.c.b16 %v998, %v997
    %v1057 = vpack.c.b16 %v1000, %v999
    %v1058 = vpack.c.b16 %v1002, %v1001
    %v1059 = vpack.c.b16 %v1004, %v1003
    %v1060 = vpack.c.b16 %v1006, %v1005
    %v1061 = vpack.c.b16 %v1008, %v1007
    %v1062 = vpack.c.b16 %v1010, %v1009
    %v1063 = vpack.c.b16 %v1012, %v1011
    %v1064 = vpack.c.b16 %v1014, %v1013
    %v1065 = vpack.c.b16 %v1016, %v1015
    %vm1115 = vcmask 130048
    %v1117 = vsel %vm1115, %v619, 0
    %v1120 = vsel %vm1115, %v626, 0
    %v1123 = vsel %vm1115, %v633, 0
    %v1126 = vsel %vm1115, %v640, 0
    %v1129 = vsel %vm1115, %v647, 0
    %v1132 = vsel %vm1115, %v654, 0
    %v1135 = vsel %vm1115, %v661, 0
    %v1138 = vsel %vm1115, %v668, 0
    %v1141 = vsel %vm1115, %v675, 0
    %v1144 = vsel %vm1115, %v682, 0
    %v1147 = vsel %vm1115, %v689, 0
    %v1150 = vsel %vm1115, %v696, 0
    %v1153 = vsel %vm1115, %v703, 0
    %v1156 = vsel %vm1115, %v710, 0
    %v1159 = vsel %vm1115, %v717, 0
    %v1162 = vsel %vm1115, %v724, 0
    %1164 = vmatprep.subr.bf16.mxu0 0
    %1165 = vmatpush1.bf16.msra.mxu0 %v1017
    %1166 = vmatprep.subr.bf16.mxu0 0
    %1167 = vmatpush1.bf16.msra.mxu0 %v1018
    %1168 = vmatprep.subr.bf16.mxu0 0
    %1169 = vmatpush1.bf16.msra.mxu0 %v1019
    %1170 = vmatprep.subr.bf16.mxu0 0
    %1171 = vmatpush1.bf16.msra.mxu0 %v1020
    %1172 = vmatprep.subr.bf16.mxu0 0
    %1173 = vmatpush1.bf16.msra.mxu0 %v1021
    %1174 = vmatprep.subr.bf16.mxu0 0
    %1175 = vmatpush1.bf16.msra.mxu0 %v1022
    %1176 = vmatprep.subr.bf16.mxu0 0
    %1177 = vmatpush1.bf16.msra.mxu0 %v1023
    %1178 = vmatprep.subr.bf16.mxu0 0
    %1179 = vmatpush1.bf16.msra.mxu0 %v1024
    %1180 = vmatprep.subr.bf16.mxu0 0
    %1181 = vmatpush1.bf16.msra.mxu0 %v1025
    %1182 = vmatprep.subr.bf16.mxu0 0
    %1183 = vmatpush1.bf16.msra.mxu0 %v1026
    %1184 = vmatprep.subr.bf16.mxu0 0
    %1185 = vmatpush1.bf16.msra.mxu0 %v1027
    %1186 = vmatprep.subr.bf16.mxu0 0
    %1187 = vmatpush1.bf16.msra.mxu0 %v1028
    %1188 = vmatprep.subr.bf16.mxu0 0
    %1189 = vmatpush1.bf16.msra.mxu0 %v1029
    %1190 = vmatprep.subr.bf16.mxu0 0
    %1191 = vmatpush1.bf16.msra.mxu0 %v1030
    %1192 = vmatprep.subr.bf16.mxu0 0
    %1193 = vmatpush1.bf16.msra.mxu0 %v1031
    %1194 = vmatprep.subr.bf16.mxu0 0
    %1195 = vmatpush1.bf16.msra.mxu0 %v1032
    %1196 = vmatprep.mubr.bf16.mxu0 %v614
    %1197 = vmatmul.mubr.bf16.gmra.mrb[0].mxu0 %v613
    %v1198 = vpop.f32.mrb[0].mxu0
    %v1199 = vadd.f32 %v259, %v1198
    %v1200 = vpop.f32.mrb[0].mxu0
    %v1201 = vpop.f32.mrb[0].mxu0
    %v1202 = vadd.f32 %v259, %v1201
    %v1203 = vpop.f32.mrb[0].mxu0
    %1204 = vmatprep.mubr.bf16.mxu0 %v621
    %1205 = vmatmul.mubr.bf16.gmra.mrb[0].mxu0 %v620
    %v1206 = vpop.f32.mrb[0].mxu0
    %v1207 = vadd.f32 %v259, %v1206
    %v1208 = vpop.f32.mrb[0].mxu0
    %v1209 = vpop.f32.mrb[0].mxu0
    %v1210 = vadd.f32 %v259, %v1209
    %v1211 = vpop.f32.mrb[0].mxu0
    %1212 = vmatprep.mubr.bf16.mxu0 %v628
    %1213 = vmatmul.mubr.bf16.gmra.mrb[0].mxu0 %v627
    %v1214 = vpop.f32.mrb[0].mxu0
    %v1215 = vadd.f32 %v259, %v1214
    %v1216 = vpop.f32.mrb[0].mxu0
    %v1217 = vpop.f32.mrb[0].mxu0
    %v1218 = vadd.f32 %v259, %v1217
    %v1219 = vpop.f32.mrb[0].mxu0
    %1220 = vmatprep.mubr.bf16.mxu0 %v635
    %1221 = vmatmul.mubr.bf16.gmra.mrb[0].mxu0 %v634
    %v1222 = vpop.f32.mrb[0].mxu0
    %v1223 = vadd.f32 %v259, %v1222
    %v1224 = vpop.f32.mrb[0].mxu0
    %v1225 = vpop.f32.mrb[0].mxu0
    %v1226 = vadd.f32 %v259, %v1225
    %v1227 = vpop.f32.mrb[0].mxu0
    %1228 = vmatprep.mubr.bf16.mxu0 %v642
    %1229 = vmatmul.mubr.bf16.gmra.mrb[0].mxu0 %v641
    %v1230 = vpop.f32.mrb[0].mxu0
    %v1231 = vadd.f32 %v259, %v1230
    %v1232 = vpop.f32.mrb[0].mxu0
    %v1233 = vpop.f32.mrb[0].mxu0
    %v1234 = vadd.f32 %v259, %v1233
    %v1235 = vpop.f32.mrb[0].mxu0
    %1236 = vmatprep.mubr.bf16.mxu0 %v649
    %1237 = vmatmul.mubr.bf16.gmra.mrb[0].mxu0 %v648
    %v1238 = vpop.f32.mrb[0].mxu0
    %v1239 = vadd.f32 %v259, %v1238
    %v1240 = vpop.f32.mrb[0].mxu0
    %v1241 = vpop.f32.mrb[0].mxu0
    %v1242 = vadd.f32 %v259, %v1241
    %v1243 = vpop.f32.mrb[0].mxu0
    %1244 = vmatprep.mubr.bf16.mxu0 %v656
    %1245 = vmatmul.mubr.bf16.gmra.mrb[0].mxu0 %v655
    %v1246 = vpop.f32.mrb[0].mxu0
    %v1247 = vadd.f32 %v259, %v1246
    %v1248 = vpop.f32.mrb[0].mxu0
    %v1249 = vpop.f32.mrb[0].mxu0
    %v1250 = vadd.f32 %v259, %v1249
    %v1251 = vpop.f32.mrb[0].mxu0
    %1252 = vmatprep.mubr.bf16.mxu0 %v663
    %1253 = vmatmul.mubr.bf16.gmra.mrb[0].mxu0 %v662
    %v1254 = vpop.f32.mrb[0].mxu0
    %v1255 = vadd.f32 %v259, %v1254
    %v1256 = vpop.f32.mrb[0].mxu0
    %v1257 = vpop.f32.mrb[0].mxu0
    %v1258 = vadd.f32 %v259, %v1257
    %v1259 = vpop.f32.mrb[0].mxu0
    %1260 = vmatprep.mubr.bf16.mxu0 %v670
    %1261 = vmatmul.mubr.bf16.gmra.mrb[0].mxu0 %v669
    %v1262 = vpop.f32.mrb[0].mxu0
    %v1263 = vadd.f32 %v259, %v1262
    %v1264 = vpop.f32.mrb[0].mxu0
    %v1265 = vpop.f32.mrb[0].mxu0
    %v1266 = vadd.f32 %v259, %v1265
    %v1267 = vpop.f32.mrb[0].mxu0
    %1268 = vmatprep.mubr.bf16.mxu0 %v677
    %1269 = vmatmul.mubr.bf16.gmra.mrb[0].mxu0 %v676
    %v1270 = vpop.f32.mrb[0].mxu0
    %v1271 = vadd.f32 %v259, %v1270
    %v1272 = vpop.f32.mrb[0].mxu0
    %v1273 = vpop.f32.mrb[0].mxu0
    %v1274 = vadd.f32 %v259, %v1273
    %v1275 = vpop.f32.mrb[0].mxu0
    %1276 = vmatprep.mubr.bf16.mxu0 %v684
    %1277 = vmatmul.mubr.bf16.gmra.mrb[0].mxu0 %v683
    %v1278 = vpop.f32.mrb[0].mxu0
    %v1279 = vadd.f32 %v259, %v1278
    %v1280 = vpop.f32.mrb[0].mxu0
    %v1281 = vpop.f32.mrb[0].mxu0
    %v1282 = vadd.f32 %v259, %v1281
    %v1283 = vpop.f32.mrb[0].mxu0
    %1284 = vmatprep.mubr.bf16.mxu0 %v691
    %1285 = vmatmul.mubr.bf16.gmra.mrb[0].mxu0 %v690
    %v1286 = vpop.f32.mrb[0].mxu0
    %v1287 = vadd.f32 %v259, %v1286
    %v1288 = vpop.f32.mrb[0].mxu0
    %v1289 = vpop.f32.mrb[0].mxu0
    %v1290 = vadd.f32 %v259, %v1289
    %v1291 = vpop.f32.mrb[0].mxu0
    %1292 = vmatprep.mubr.bf16.mxu0 %v698
    %1293 = vmatmul.mubr.bf16.gmra.mrb[0].mxu0 %v697
    %v1294 = vpop.f32.mrb[0].mxu0
    %v1295 = vadd.f32 %v259, %v1294
    %v1296 = vpop.f32.mrb[0].mxu0
    %v1297 = vpop.f32.mrb[0].mxu0
    %v1298 = vadd.f32 %v259, %v1297
    %v1299 = vpop.f32.mrb[0].mxu0
    %1300 = vmatprep.mubr.bf16.mxu0 %v705
    %1301 = vmatmul.mubr.bf16.gmra.mrb[0].mxu0 %v704
    %v1302 = vpop.f32.mrb[0].mxu0
    %v1303 = vadd.f32 %v259, %v1302
    %v1304 = vpop.f32.mrb[0].mxu0
    %v1305 = vpop.f32.mrb[0].mxu0
    %v1306 = vadd.f32 %v259, %v1305
    %v1307 = vpop.f32.mrb[0].mxu0
    %1308 = vmatprep.mubr.bf16.mxu0 %v712
    %1309 = vmatmul.mubr.bf16.gmra.mrb[0].mxu0 %v711
    %v1310 = vpop.f32.mrb[0].mxu0
    %v1311 = vadd.f32 %v259, %v1310
    %v1312 = vpop.f32.mrb[0].mxu0
    %v1313 = vpop.f32.mrb[0].mxu0
    %v1314 = vadd.f32 %v259, %v1313
    %v1315 = vpop.f32.mrb[0].mxu0
    %1316 = vmatprep.mubr.bf16.mxu0 %v719
    %1317 = vmatmul.mubr.bf16.gmra.mrb[0].mxu0 %v718
    %v1318 = vpop.f32.mrb[0].mxu0
    %v1319 = vadd.f32 %v259, %v1318
    %v1320 = vpop.f32.mrb[0].mxu0
    %v1321 = vpop.f32.mrb[0].mxu0
    %v1322 = vadd.f32 %v259, %v1321
    %v1323 = vpop.f32.mrb[0].mxu0
    %1324 = vdwg.mxu0
    %1325 = vmatprep.subr.bf16.mxu0 0
    %1326 = vmatpush1.bf16.msra.mxu0 %v1033
    %1327 = vmatprep.subr.bf16.mxu0 0
    %1328 = vmatpush1.bf16.msra.mxu0 %v1034
    %1329 = vmatprep.subr.bf16.mxu0 0
    %1330 = vmatpush1.bf16.msra.mxu0 %v1035
    %1331 = vmatprep.subr.bf16.mxu0 0
    %1332 = vmatpush1.bf16.msra.mxu0 %v1036
    %1333 = vmatprep.subr.bf16.mxu0 0
    %1334 = vmatpush1.bf16.msra.mxu0 %v1037
    %1335 = vmatprep.subr.bf16.mxu0 0
    %1336 = vmatpush1.bf16.msra.mxu0 %v1038
    %1337 = vmatprep.subr.bf16.mxu0 0
    %1338 = vmatpush1.bf16.msra.mxu0 %v1039
    %1339 = vmatprep.subr.bf16.mxu0 0
    %1340 = vmatpush1.bf16.msra.mxu0 %v1040
    %1341 = vmatprep.subr.bf16.mxu0 0
    %1342 = vmatpush1.bf16.msra.mxu0 %v1041
    %1343 = vmatprep.subr.bf16.mxu0 0
    %1344 = vmatpush1.bf16.msra.mxu0 %v1042
    %1345 = vmatprep.subr.bf16.mxu0 0
    %1346 = vmatpush1.bf16.msra.mxu0 %v1043
    %1347 = vmatprep.subr.bf16.mxu0 0
    %1348 = vmatpush1.bf16.msra.mxu0 %v1044
    %1349 = vmatprep.subr.bf16.mxu0 0
    %1350 = vmatpush1.bf16.msra.mxu0 %v1045
    %1351 = vmatprep.subr.bf16.mxu0 0
    %1352 = vmatpush1.bf16.msra.mxu0 %v1046
    %1353 = vmatprep.subr.bf16.mxu0 0
    %1354 = vmatpush1.bf16.msra.mxu0 %v1047
    %1355 = vmatprep.subr.bf16.mxu0 0
    %1356 = vmatpush1.bf16.msra.mxu0 %v1048
    %1357 = vmatprep.mubr.bf16.mxu0 %v616
    %1358 = vmatmul.mubr.bf16.gmra.mrb[0].mxu0 %v615
    %v1359 = vpop.f32.mrb[0].mxu0
    %v1360 = vadd.f32 %v1199, %v1359
    %v1361 = vpop.f32.mrb[0].mxu0
    %v1362 = vpop.f32.mrb[0].mxu0
    %v1363 = vadd.f32 %v1202, %v1362
    %v1364 = vpop.f32.mrb[0].mxu0
    %1365 = vmatprep.mubr.bf16.mxu0 %v623
    %1366 = vmatmul.mubr.bf16.gmra.mrb[0].mxu0 %v622
    %v1367 = vpop.f32.mrb[0].mxu0
    %v1368 = vadd.f32 %v1207, %v1367
    %v1369 = vpop.f32.mrb[0].mxu0
    %v1370 = vpop.f32.mrb[0].mxu0
    %v1371 = vadd.f32 %v1210, %v1370
    %v1372 = vpop.f32.mrb[0].mxu0
    %1373 = vmatprep.mubr.bf16.mxu0 %v630
    %1374 = vmatmul.mubr.bf16.gmra.mrb[0].mxu0 %v629
    %v1375 = vpop.f32.mrb[0].mxu0
    %v1376 = vadd.f32 %v1215, %v1375
    %v1377 = vpop.f32.mrb[0].mxu0
    %v1378 = vpop.f32.mrb[0].mxu0
    %v1379 = vadd.f32 %v1218, %v1378
    %v1380 = vpop.f32.mrb[0].mxu0
    %1381 = vmatprep.mubr.bf16.mxu0 %v637
    %1382 = vmatmul.mubr.bf16.gmra.mrb[0].mxu0 %v636
    %v1383 = vpop.f32.mrb[0].mxu0
    %v1384 = vadd.f32 %v1223, %v1383
    %v1385 = vpop.f32.mrb[0].mxu0
    %v1386 = vpop.f32.mrb[0].mxu0
    %v1387 = vadd.f32 %v1226, %v1386
    %v1388 = vpop.f32.mrb[0].mxu0
    %1389 = vmatprep.mubr.bf16.mxu0 %v644
    %1390 = vmatmul.mubr.bf16.gmra.mrb[0].mxu0 %v643
    %v1391 = vpop.f32.mrb[0].mxu0
    %v1392 = vadd.f32 %v1231, %v1391
    %v1393 = vpop.f32.mrb[0].mxu0
    %v1394 = vpop.f32.mrb[0].mxu0
    %v1395 = vadd.f32 %v1234, %v1394
    %v1396 = vpop.f32.mrb[0].mxu0
    %1397 = vmatprep.mubr.bf16.mxu0 %v651
    %1398 = vmatmul.mubr.bf16.gmra.mrb[0].mxu0 %v650
    %v1399 = vpop.f32.mrb[0].mxu0
    %v1400 = vadd.f32 %v1239, %v1399
    %v1401 = vpop.f32.mrb[0].mxu0
    %v1402 = vpop.f32.mrb[0].mxu0
    %v1403 = vadd.f32 %v1242, %v1402
    %v1404 = vpop.f32.mrb[0].mxu0
    %1405 = vmatprep.mubr.bf16.mxu0 %v658
    %1406 = vmatmul.mubr.bf16.gmra.mrb[0].mxu0 %v657
    %v1407 = vpop.f32.mrb[0].mxu0
    %v1408 = vadd.f32 %v1247, %v1407
    %v1409 = vpop.f32.mrb[0].mxu0
    %v1410 = vpop.f32.mrb[0].mxu0
    %v1411 = vadd.f32 %v1250, %v1410
    %v1412 = vpop.f32.mrb[0].mxu0
    %1413 = vmatprep.mubr.bf16.mxu0 %v665
    %1414 = vmatmul.mubr.bf16.gmra.mrb[0].mxu0 %v664
    %v1415 = vpop.f32.mrb[0].mxu0
    %v1416 = vadd.f32 %v1255, %v1415
    %v1417 = vpop.f32.mrb[0].mxu0
    %v1418 = vpop.f32.mrb[0].mxu0
    %v1419 = vadd.f32 %v1258, %v1418
    %v1420 = vpop.f32.mrb[0].mxu0
    %1421 = vmatprep.mubr.bf16.mxu0 %v672
    %1422 = vmatmul.mubr.bf16.gmra.mrb[0].mxu0 %v671
    %v1423 = vpop.f32.mrb[0].mxu0
    %v1424 = vadd.f32 %v1263, %v1423
    %v1425 = vpop.f32.mrb[0].mxu0
    %v1426 = vpop.f32.mrb[0].mxu0
    %v1427 = vadd.f32 %v1266, %v1426
    %v1428 = vpop.f32.mrb[0].mxu0
    %1429 = vmatprep.mubr.bf16.mxu0 %v679
    %1430 = vmatmul.mubr.bf16.gmra.mrb[0].mxu0 %v678
    %v1431 = vpop.f32.mrb[0].mxu0
    %v1432 = vadd.f32 %v1271, %v1431
    %v1433 = vpop.f32.mrb[0].mxu0
    %v1434 = vpop.f32.mrb[0].mxu0
    %v1435 = vadd.f32 %v1274, %v1434
    %v1436 = vpop.f32.mrb[0].mxu0
    %1437 = vmatprep.mubr.bf16.mxu0 %v686
    %1438 = vmatmul.mubr.bf16.gmra.mrb[0].mxu0 %v685
    %v1439 = vpop.f32.mrb[0].mxu0
    %v1440 = vadd.f32 %v1279, %v1439
    %v1441 = vpop.f32.mrb[0].mxu0
    %v1442 = vpop.f32.mrb[0].mxu0
    %v1443 = vadd.f32 %v1282, %v1442
    %v1444 = vpop.f32.mrb[0].mxu0
    %1445 = vmatprep.mubr.bf16.mxu0 %v693
    %1446 = vmatmul.mubr.bf16.gmra.mrb[0].mxu0 %v692
    %v1447 = vpop.f32.mrb[0].mxu0
    %v1448 = vadd.f32 %v1287, %v1447
    %v1449 = vpop.f32.mrb[0].mxu0
    %v1450 = vpop.f32.mrb[0].mxu0
    %v1451 = vadd.f32 %v1290, %v1450
    %v1452 = vpop.f32.mrb[0].mxu0
    %1453 = vmatprep.mubr.bf16.mxu0 %v700
    %1454 = vmatmul.mubr.bf16.gmra.mrb[0].mxu0 %v699
    %v1455 = vpop.f32.mrb[0].mxu0
    %v1456 = vadd.f32 %v1295, %v1455
    %v1457 = vpop.f32.mrb[0].mxu0
    %v1458 = vpop.f32.mrb[0].mxu0
    %v1459 = vadd.f32 %v1298, %v1458
    %v1460 = vpop.f32.mrb[0].mxu0
    %1461 = vmatprep.mubr.bf16.mxu0 %v707
    %1462 = vmatmul.mubr.bf16.gmra.mrb[0].mxu0 %v706
    %v1463 = vpop.f32.mrb[0].mxu0
    %v1464 = vadd.f32 %v1303, %v1463
    %v1465 = vpop.f32.mrb[0].mxu0
    %v1466 = vpop.f32.mrb[0].mxu0
    %v1467 = vadd.f32 %v1306, %v1466
    %v1468 = vpop.f32.mrb[0].mxu0
    %1469 = vmatprep.mubr.bf16.mxu0 %v714
    %1470 = vmatmul.mubr.bf16.gmra.mrb[0].mxu0 %v713
    %v1471 = vpop.f32.mrb[0].mxu0
    %v1472 = vadd.f32 %v1311, %v1471
    %v1473 = vpop.f32.mrb[0].mxu0
    %v1474 = vpop.f32.mrb[0].mxu0
    %v1475 = vadd.f32 %v1314, %v1474
    %v1476 = vpop.f32.mrb[0].mxu0
    %1477 = vmatprep.mubr.bf16.mxu0 %v721
    %1478 = vmatmul.mubr.bf16.gmra.mrb[0].mxu0 %v720
    %v1479 = vpop.f32.mrb[0].mxu0
    %v1480 = vadd.f32 %v1319, %v1479
    %v1481 = vpop.f32.mrb[0].mxu0
    %v1482 = vpop.f32.mrb[0].mxu0
    %v1483 = vadd.f32 %v1322, %v1482
    %v1484 = vpop.f32.mrb[0].mxu0
    %1485 = vdwg.mxu0
    %1486 = vmatprep.subr.bf16.mxu0 0
    %1487 = vmatpush1.bf16.msra.mxu0 %v1049
    %1488 = vmatprep.subr.bf16.mxu0 0
    %1489 = vmatpush1.bf16.msra.mxu0 %v1050
    %1490 = vmatprep.subr.bf16.mxu0 0
    %1491 = vmatpush1.bf16.msra.mxu0 %v1051
    %1492 = vmatprep.subr.bf16.mxu0 0
    %1493 = vmatpush1.bf16.msra.mxu0 %v1052
    %1494 = vmatprep.subr.bf16.mxu0 0
    %1495 = vmatpush1.bf16.msra.mxu0 %v1053
    %1496 = vmatprep.subr.bf16.mxu0 0
    %1497 = vmatpush1.bf16.msra.mxu0 %v1054
    %1498 = vmatprep.subr.bf16.mxu0 0
    %1499 = vmatpush1.bf16.msra.mxu0 %v1055
    %1500 = vmatprep.subr.bf16.mxu0 0
    %1501 = vmatpush1.bf16.msra.mxu0 %v1056
    %1502 = vmatprep.subr.bf16.mxu0 0
    %1503 = vmatpush1.bf16.msra.mxu0 %v1057
    %1504 = vmatprep.subr.bf16.mxu0 0
    %1505 = vmatpush1.bf16.msra.mxu0 %v1058
    %1506 = vmatprep.subr.bf16.mxu0 0
    %1507 = vmatpush1.bf16.msra.mxu0 %v1059
    %1508 = vmatprep.subr.bf16.mxu0 0
    %1509 = vmatpush1.bf16.msra.mxu0 %v1060
    %1510 = vmatprep.subr.bf16.mxu0 0
    %1511 = vmatpush1.bf16.msra.mxu0 %v1061
    %1512 = vmatprep.subr.bf16.mxu0 0
    %1513 = vmatpush1.bf16.msra.mxu0 %v1062
    %1514 = vmatprep.subr.bf16.mxu0 0
    %1515 = vmatpush1.bf16.msra.mxu0 %v1063
    %1516 = vmatprep.subr.bf16.mxu0 0
    %1517 = vmatpush1.bf16.msra.mxu0 %v1064
    %1518 = vmatprep.mubr.bf16.mxu0 %v618
    %1519 = vmatmul.mubr.bf16.gmra.mrb[0].mxu0 %v617
    %v1520 = vpop.f32.mrb[0].mxu0
    %v1521 = vadd.f32 %v1360, %v1520
    %v1522 = vpop.f32.mrb[0].mxu0
    %v1523 = vpop.f32.mrb[0].mxu0
    %v1524 = vadd.f32 %v1363, %v1523
    %v1525 = vpop.f32.mrb[0].mxu0
    %1526 = vmatprep.mubr.bf16.mxu0 %v625
    %1527 = vmatmul.mubr.bf16.gmra.mrb[0].mxu0 %v624
    %v1528 = vpop.f32.mrb[0].mxu0
    %v1529 = vadd.f32 %v1368, %v1528
    %v1530 = vpop.f32.mrb[0].mxu0
    %v1531 = vpop.f32.mrb[0].mxu0
    %v1532 = vadd.f32 %v1371, %v1531
    %v1533 = vpop.f32.mrb[0].mxu0
    %1534 = vmatprep.mubr.bf16.mxu0 %v632
    %1535 = vmatmul.mubr.bf16.gmra.mrb[0].mxu0 %v631
    %v1536 = vpop.f32.mrb[0].mxu0
    %v1537 = vadd.f32 %v1376, %v1536
    %v1538 = vpop.f32.mrb[0].mxu0
    %v1539 = vpop.f32.mrb[0].mxu0
    %v1540 = vadd.f32 %v1379, %v1539
    %v1541 = vpop.f32.mrb[0].mxu0
    %1542 = vmatprep.mubr.bf16.mxu0 %v639
    %1543 = vmatmul.mubr.bf16.gmra.mrb[0].mxu0 %v638
    %v1544 = vpop.f32.mrb[0].mxu0
    %v1545 = vadd.f32 %v1384, %v1544
    %v1546 = vpop.f32.mrb[0].mxu0
    %v1547 = vpop.f32.mrb[0].mxu0
    %v1548 = vadd.f32 %v1387, %v1547
    %v1549 = vpop.f32.mrb[0].mxu0
    %1550 = vmatprep.mubr.bf16.mxu0 %v646
    %1551 = vmatmul.mubr.bf16.gmra.mrb[0].mxu0 %v645
    %v1552 = vpop.f32.mrb[0].mxu0
    %v1553 = vadd.f32 %v1392, %v1552
    %v1554 = vpop.f32.mrb[0].mxu0
    %v1555 = vpop.f32.mrb[0].mxu0
    %v1556 = vadd.f32 %v1395, %v1555
    %v1557 = vpop.f32.mrb[0].mxu0
    %1558 = vmatprep.mubr.bf16.mxu0 %v653
    %1559 = vmatmul.mubr.bf16.gmra.mrb[0].mxu0 %v652
    %v1560 = vpop.f32.mrb[0].mxu0
    %v1561 = vadd.f32 %v1400, %v1560
    %v1562 = vpop.f32.mrb[0].mxu0
    %v1563 = vpop.f32.mrb[0].mxu0
    %v1564 = vadd.f32 %v1403, %v1563
    %v1565 = vpop.f32.mrb[0].mxu0
    %1566 = vmatprep.mubr.bf16.mxu0 %v660
    %1567 = vmatmul.mubr.bf16.gmra.mrb[0].mxu0 %v659
    %v1568 = vpop.f32.mrb[0].mxu0
    %v1569 = vadd.f32 %v1408, %v1568
    %v1570 = vpop.f32.mrb[0].mxu0
    %v1571 = vpop.f32.mrb[0].mxu0
    %v1572 = vadd.f32 %v1411, %v1571
    %v1573 = vpop.f32.mrb[0].mxu0
    %1574 = vmatprep.mubr.bf16.mxu0 %v667
    %1575 = vmatmul.mubr.bf16.gmra.mrb[0].mxu0 %v666
    %v1576 = vpop.f32.mrb[0].mxu0
    %v1577 = vadd.f32 %v1416, %v1576
    %v1578 = vpop.f32.mrb[0].mxu0
    %v1579 = vpop.f32.mrb[0].mxu0
    %v1580 = vadd.f32 %v1419, %v1579
    %v1581 = vpop.f32.mrb[0].mxu0
    %1582 = vmatprep.mubr.bf16.mxu0 %v674
    %1583 = vmatmul.mubr.bf16.gmra.mrb[0].mxu0 %v673
    %v1584 = vpop.f32.mrb[0].mxu0
    %v1585 = vadd.f32 %v1424, %v1584
    %v1586 = vpop.f32.mrb[0].mxu0
    %v1587 = vpop.f32.mrb[0].mxu0
    %v1588 = vadd.f32 %v1427, %v1587
    %v1589 = vpop.f32.mrb[0].mxu0
    %1590 = vmatprep.mubr.bf16.mxu0 %v681
    %1591 = vmatmul.mubr.bf16.gmra.mrb[0].mxu0 %v680
    %v1592 = vpop.f32.mrb[0].mxu0
    %v1593 = vadd.f32 %v1432, %v1592
    %v1594 = vpop.f32.mrb[0].mxu0
    %v1595 = vpop.f32.mrb[0].mxu0
    %v1596 = vadd.f32 %v1435, %v1595
    %v1597 = vpop.f32.mrb[0].mxu0
    %1598 = vmatprep.mubr.bf16.mxu0 %v688
    %1599 = vmatmul.mubr.bf16.gmra.mrb[0].mxu0 %v687
    %v1600 = vpop.f32.mrb[0].mxu0
    %v1601 = vadd.f32 %v1440, %v1600
    %v1602 = vpop.f32.mrb[0].mxu0
    %v1603 = vpop.f32.mrb[0].mxu0
    %v1604 = vadd.f32 %v1443, %v1603
    %v1605 = vpop.f32.mrb[0].mxu0
    %1606 = vmatprep.mubr.bf16.mxu0 %v695
    %1607 = vmatmul.mubr.bf16.gmra.mrb[0].mxu0 %v694
    %v1608 = vpop.f32.mrb[0].mxu0
    %v1609 = vadd.f32 %v1448, %v1608
    %v1610 = vpop.f32.mrb[0].mxu0
    %v1611 = vpop.f32.mrb[0].mxu0
    %v1612 = vadd.f32 %v1451, %v1611
    %v1613 = vpop.f32.mrb[0].mxu0
    %1614 = vmatprep.mubr.bf16.mxu0 %v702
    %1615 = vmatmul.mubr.bf16.gmra.mrb[0].mxu0 %v701
    %v1616 = vpop.f32.mrb[0].mxu0
    %v1617 = vadd.f32 %v1456, %v1616
    %v1618 = vpop.f32.mrb[0].mxu0
    %v1619 = vpop.f32.mrb[0].mxu0
    %v1620 = vadd.f32 %v1459, %v1619
    %v1621 = vpop.f32.mrb[0].mxu0
    %1622 = vmatprep.mubr.bf16.mxu0 %v709
    %1623 = vmatmul.mubr.bf16.gmra.mrb[0].mxu0 %v708
    %v1624 = vpop.f32.mrb[0].mxu0
    %v1625 = vadd.f32 %v1464, %v1624
    %v1626 = vpop.f32.mrb[0].mxu0
    %v1627 = vpop.f32.mrb[0].mxu0
    %v1628 = vadd.f32 %v1467, %v1627
    %v1629 = vpop.f32.mrb[0].mxu0
    %1630 = vmatprep.mubr.bf16.mxu0 %v716
    %1631 = vmatmul.mubr.bf16.gmra.mrb[0].mxu0 %v715
    %v1632 = vpop.f32.mrb[0].mxu0
    %v1633 = vadd.f32 %v1472, %v1632
    %v1634 = vpop.f32.mrb[0].mxu0
    %v1635 = vpop.f32.mrb[0].mxu0
    %v1636 = vadd.f32 %v1475, %v1635
    %v1637 = vpop.f32.mrb[0].mxu0
    %1638 = vmatprep.mubr.bf16.mxu0 %v723
    %1639 = vmatmul.mubr.bf16.gmra.mrb[0].mxu0 %v722
    %v1640 = vpop.f32.mrb[0].mxu0
    %v1641 = vadd.f32 %v1480, %v1640
    %v1642 = vpop.f32.mrb[0].mxu0
    %v1643 = vpop.f32.mrb[0].mxu0
    %v1644 = vadd.f32 %v1483, %v1643
    %v1645 = vpop.f32.mrb[0].mxu0
    %1646 = vdwg.mxu0
    %1647 = vmatprep.subr.bf16.mxu0 0
    %1648 = vmatpush1.bf16.msra.mxu0 %v1065
    %1649 = vmatprep.subr.bf16.mxu0 0
    %1650 = vmatpush1.bf16.msra.mxu0 0
    %1651 = vmatprep.subr.bf16.mxu0 0
    %1652 = vmatpush1.bf16.msra.mxu0 0
    %1653 = vmatprep.subr.bf16.mxu0 0
    %1654 = vmatpush1.bf16.msra.mxu0 0
    %1655 = vmatprep.subr.bf16.mxu0 0
    %1656 = vmatpush1.bf16.msra.mxu0 0
    %1657 = vmatprep.subr.bf16.mxu0 0
    %1658 = vmatpush1.bf16.msra.mxu0 0
    %1659 = vmatprep.subr.bf16.mxu0 0
    %1660 = vmatpush1.bf16.msra.mxu0 0
    %1661 = vmatprep.subr.bf16.mxu0 0
    %1662 = vmatpush1.bf16.msra.mxu0 0
    %1663 = vmatprep.subr.bf16.mxu0 0
    %1664 = vmatpush1.bf16.msra.mxu0 0
    %1665 = vmatprep.subr.bf16.mxu0 0
    %1666 = vmatpush1.bf16.msra.mxu0 0
    %1667 = vmatprep.subr.bf16.mxu0 0
    %1668 = vmatpush1.bf16.msra.mxu0 0
    %1669 = vmatprep.subr.bf16.mxu0 0
    %1670 = vmatpush1.bf16.msra.mxu0 0
    %1671 = vmatprep.subr.bf16.mxu0 0
    %1672 = vmatpush1.bf16.msra.mxu0 0
    %1673 = vmatprep.subr.bf16.mxu0 0
    %1674 = vmatpush1.bf16.msra.mxu0 0
    %1675 = vmatprep.subr.bf16.mxu0 0
    %1676 = vmatpush1.bf16.msra.mxu0 0
    %1677 = vmatprep.subr.bf16.mxu0 0
    %1678 = vmatpush1.bf16.msra.mxu0 0
    %1679 = vmatprep.mubr.bf16.mxu0 0
    %1680 = vmatmul.mubr.bf16.gmra.mrb[0].mxu0 %v1117
    %v1681 = vpop.f32.mrb[0].mxu0
    %v1682 = vadd.f32 %v1521, %v1681
    %v1683 = vpop.f32.mrb[0].mxu0
    %v1684 = vpop.f32.mrb[0].mxu0
    %v1685 = vadd.f32 %v1524, %v1684
    %v1686 = vpop.f32.mrb[0].mxu0
    %1687 = vmatprep.mubr.bf16.mxu0 0
    %1688 = vmatmul.mubr.bf16.gmra.mrb[0].mxu0 %v1120
    %v1689 = vpop.f32.mrb[0].mxu0
    %v1690 = vadd.f32 %v1529, %v1689
    %v1691 = vpop.f32.mrb[0].mxu0
    %v1692 = vpop.f32.mrb[0].mxu0
    %v1693 = vadd.f32 %v1532, %v1692
    %v1694 = vpop.f32.mrb[0].mxu0
    %1695 = vmatprep.mubr.bf16.mxu0 0
    %1696 = vmatmul.mubr.bf16.gmra.mrb[0].mxu0 %v1123
    %v1697 = vpop.f32.mrb[0].mxu0
    %v1698 = vadd.f32 %v1537, %v1697
    %v1699 = vpop.f32.mrb[0].mxu0
    %v1700 = vpop.f32.mrb[0].mxu0
    %v1701 = vadd.f32 %v1540, %v1700
    %v1702 = vpop.f32.mrb[0].mxu0
    %1703 = vmatprep.mubr.bf16.mxu0 0
    %1704 = vmatmul.mubr.bf16.gmra.mrb[0].mxu0 %v1126
    %v1705 = vpop.f32.mrb[0].mxu0
    %v1706 = vadd.f32 %v1545, %v1705
    %v1707 = vpop.f32.mrb[0].mxu0
    %v1708 = vpop.f32.mrb[0].mxu0
    %v1709 = vadd.f32 %v1548, %v1708
    %v1710 = vpop.f32.mrb[0].mxu0
    %1711 = vmatprep.mubr.bf16.mxu0 0
    %1712 = vmatmul.mubr.bf16.gmra.mrb[0].mxu0 %v1129
    %v1713 = vpop.f32.mrb[0].mxu0
    %v1714 = vadd.f32 %v1553, %v1713
    %v1715 = vpop.f32.mrb[0].mxu0
    %v1716 = vpop.f32.mrb[0].mxu0
    %v1717 = vadd.f32 %v1556, %v1716
    %v1718 = vpop.f32.mrb[0].mxu0
    %1719 = vmatprep.mubr.bf16.mxu0 0
    %1720 = vmatmul.mubr.bf16.gmra.mrb[0].mxu0 %v1132
    %v1721 = vpop.f32.mrb[0].mxu0
    %v1722 = vadd.f32 %v1561, %v1721
    %v1723 = vpop.f32.mrb[0].mxu0
    %v1724 = vpop.f32.mrb[0].mxu0
    %v1725 = vadd.f32 %v1564, %v1724
    %v1726 = vpop.f32.mrb[0].mxu0
    %1727 = vmatprep.mubr.bf16.mxu0 0
    %1728 = vmatmul.mubr.bf16.gmra.mrb[0].mxu0 %v1135
    %v1729 = vpop.f32.mrb[0].mxu0
    %v1730 = vadd.f32 %v1569, %v1729
    %v1731 = vpop.f32.mrb[0].mxu0
    %v1732 = vpop.f32.mrb[0].mxu0
    %v1733 = vadd.f32 %v1572, %v1732
    %v1734 = vpop.f32.mrb[0].mxu0
    %1735 = vmatprep.mubr.bf16.mxu0 0
    %1736 = vmatmul.mubr.bf16.gmra.mrb[0].mxu0 %v1138
    %v1737 = vpop.f32.mrb[0].mxu0
    %v1738 = vadd.f32 %v1577, %v1737
    %v1739 = vpop.f32.mrb[0].mxu0
    %v1740 = vpop.f32.mrb[0].mxu0
    %v1741 = vadd.f32 %v1580, %v1740
    %v1742 = vpop.f32.mrb[0].mxu0
    %1743 = vmatprep.mubr.bf16.mxu0 0
    %1744 = vmatmul.mubr.bf16.gmra.mrb[0].mxu0 %v1141
    %v1745 = vpop.f32.mrb[0].mxu0
    %v1746 = vadd.f32 %v1585, %v1745
    %v1747 = vpop.f32.mrb[0].mxu0
    %v1748 = vpop.f32.mrb[0].mxu0
    %v1749 = vadd.f32 %v1588, %v1748
    %v1750 = vpop.f32.mrb[0].mxu0
    %1751 = vmatprep.mubr.bf16.mxu0 0
    %1752 = vmatmul.mubr.bf16.gmra.mrb[0].mxu0 %v1144
    %v1753 = vpop.f32.mrb[0].mxu0
    %v1754 = vadd.f32 %v1593, %v1753
    %v1755 = vpop.f32.mrb[0].mxu0
    %v1756 = vpop.f32.mrb[0].mxu0
    %v1757 = vadd.f32 %v1596, %v1756
    %v1758 = vpop.f32.mrb[0].mxu0
    %1759 = vmatprep.mubr.bf16.mxu0 0
    %1760 = vmatmul.mubr.bf16.gmra.mrb[0].mxu0 %v1147
    %v1761 = vpop.f32.mrb[0].mxu0
    %v1762 = vadd.f32 %v1601, %v1761
    %v1763 = vpop.f32.mrb[0].mxu0
    %v1764 = vpop.f32.mrb[0].mxu0
    %v1765 = vadd.f32 %v1604, %v1764
    %v1766 = vpop.f32.mrb[0].mxu0
    %1767 = vmatprep.mubr.bf16.mxu0 0
    %1768 = vmatmul.mubr.bf16.gmra.mrb[0].mxu0 %v1150
    %v1769 = vpop.f32.mrb[0].mxu0
    %v1770 = vadd.f32 %v1609, %v1769
    %v1771 = vpop.f32.mrb[0].mxu0
    %v1772 = vpop.f32.mrb[0].mxu0
    %v1773 = vadd.f32 %v1612, %v1772
    %v1774 = vpop.f32.mrb[0].mxu0
    %1775 = vmatprep.mubr.bf16.mxu0 0
    %1776 = vmatmul.mubr.bf16.gmra.mrb[0].mxu0 %v1153
    %v1777 = vpop.f32.mrb[0].mxu0
    %v1778 = vadd.f32 %v1617, %v1777
    %v1779 = vpop.f32.mrb[0].mxu0
    %v1780 = vpop.f32.mrb[0].mxu0
    %v1781 = vadd.f32 %v1620, %v1780
    %v1782 = vpop.f32.mrb[0].mxu0
    %1783 = vmatprep.mubr.bf16.mxu0 0
    %1784 = vmatmul.mubr.bf16.gmra.mrb[0].mxu0 %v1156
    %v1785 = vpop.f32.mrb[0].mxu0
    %v1786 = vadd.f32 %v1625, %v1785
    %v1787 = vpop.f32.mrb[0].mxu0
    %v1788 = vpop.f32.mrb[0].mxu0
    %v1789 = vadd.f32 %v1628, %v1788
    %v1790 = vpop.f32.mrb[0].mxu0
    %1791 = vmatprep.mubr.bf16.mxu0 0
    %1792 = vmatmul.mubr.bf16.gmra.mrb[0].mxu0 %v1159
    %v1793 = vpop.f32.mrb[0].mxu0
    %v1794 = vadd.f32 %v1633, %v1793
    %v1795 = vpop.f32.mrb[0].mxu0
    %v1796 = vpop.f32.mrb[0].mxu0
    %v1797 = vadd.f32 %v1636, %v1796
    %v1798 = vpop.f32.mrb[0].mxu0
    %1799 = vmatprep.mubr.bf16.mxu0 0
    %1800 = vmatmul.mubr.bf16.gmra.mrb[0].mxu0 %v1162
    %v1801 = vpop.f32.mrb[0].mxu0
    %v1802 = vadd.f32 %v1641, %v1801
    %v1803 = vpop.f32.mrb[0].mxu0
    %v1804 = vpop.f32.mrb[0].mxu0
    %v1805 = vadd.f32 %v1644, %v1804
    %v1806 = vpop.f32.mrb[0].mxu0
    %1807 = vdwg.mxu0
    %v1808 = vxor.u32 %v1682, 2147483648
    %v1809 = vxor.u32 %v1685, 2147483648
    %v1810 = vxor.u32 %v1690, 2147483648
    %v1811 = vxor.u32 %v1693, 2147483648
    %v1812 = vxor.u32 %v1698, 2147483648
    %v1813 = vxor.u32 %v1701, 2147483648
    %v1814 = vxor.u32 %v1706, 2147483648
    %v1815 = vxor.u32 %v1709, 2147483648
    %v1816 = vxor.u32 %v1714, 2147483648
    %v1817 = vxor.u32 %v1717, 2147483648
    %v1818 = vxor.u32 %v1722, 2147483648
    %v1819 = vxor.u32 %v1725, 2147483648
    %v1820 = vxor.u32 %v1730, 2147483648
    %v1821 = vxor.u32 %v1733, 2147483648
    %v1822 = vxor.u32 %v1738, 2147483648
    %v1823 = vxor.u32 %v1741, 2147483648
    %v1824 = vxor.u32 %v1746, 2147483648
    %v1825 = vxor.u32 %v1749, 2147483648
    %v1826 = vxor.u32 %v1754, 2147483648
    %v1827 = vxor.u32 %v1757, 2147483648
    %v1828 = vxor.u32 %v1762, 2147483648
    %v1829 = vxor.u32 %v1765, 2147483648
    %v1830 = vxor.u32 %v1770, 2147483648
    %v1831 = vxor.u32 %v1773, 2147483648
    %v1832 = vxor.u32 %v1778, 2147483648
    %v1833 = vxor.u32 %v1781, 2147483648
    %v1834 = vxor.u32 %v1786, 2147483648
    %v1835 = vxor.u32 %v1789, 2147483648
    %v1836 = vxor.u32 %v1794, 2147483648
    %v1837 = vxor.u32 %v1797, 2147483648
    %v1838 = vxor.u32 %v1802, 2147483648
    %v1839 = vxor.u32 %v1805, 2147483648
    %v1840 = vmul.f32 %v1808, 1.442695
    %v1841 = vpow.pop %v1840
    %v1842 = vmul.f32 %v1809, 1.442695
    %v1843 = vpow.pop %v1842
    %v1844 = vmul.f32 %v1810, 1.442695
    %v1845 = vpow.pop %v1844
    %v1846 = vmul.f32 %v1811, 1.442695
    %v1847 = vpow.pop %v1846
    %v1848 = vmul.f32 %v1812, 1.442695
    %v1849 = vpow.pop %v1848
    %v1850 = vmul.f32 %v1813, 1.442695
    %v1851 = vpow.pop %v1850
    %v1852 = vmul.f32 %v1814, 1.442695
    %v1853 = vpow.pop %v1852
    %v1854 = vmul.f32 %v1815, 1.442695
    %v1855 = vpow.pop %v1854
    %v1856 = vmul.f32 %v1816, 1.442695
    %v1857 = vpow.pop %v1856
    %v1858 = vmul.f32 %v1817, 1.442695
    %v1859 = vpow.pop %v1858
    %v1860 = vmul.f32 %v1818, 1.442695
    %v1861 = vpow.pop %v1860
    %v1862 = vmul.f32 %v1819, 1.442695
    %v1863 = vpow.pop %v1862
    %v1864 = vmul.f32 %v1820, 1.442695
    %v1865 = vpow.pop %v1864
    %v1866 = vmul.f32 %v1821, 1.442695
    %v1867 = vpow.pop %v1866
    %v1868 = vmul.f32 %v1822, 1.442695
    %v1869 = vpow.pop %v1868
    %v1870 = vmul.f32 %v1823, 1.442695
    %v1871 = vpow.pop %v1870
    %v1872 = vmul.f32 %v1824, 1.442695
    %v1873 = vpow.pop %v1872
    %v1874 = vmul.f32 %v1825, 1.442695
    %v1875 = vpow.pop %v1874
    %v1876 = vmul.f32 %v1826, 1.442695
    %v1877 = vpow.pop %v1876
    %v1878 = vmul.f32 %v1827, 1.442695
    %v1879 = vpow.pop %v1878
    %v1880 = vmul.f32 %v1828, 1.442695
    %v1881 = vpow.pop %v1880
    %v1882 = vmul.f32 %v1829, 1.442695
    %v1883 = vpow.pop %v1882
    %v1884 = vmul.f32 %v1830, 1.442695
    %v1885 = vpow.pop %v1884
    %v1886 = vmul.f32 %v1831, 1.442695
    %v1887 = vpow.pop %v1886
    %v1888 = vmul.f32 %v1832, 1.442695
    %v1889 = vpow.pop %v1888
    %v1890 = vmul.f32 %v1833, 1.442695
    %v1891 = vpow.pop %v1890
    %v1892 = vmul.f32 %v1834, 1.442695
    %v1893 = vpow.pop %v1892
    %v1894 = vmul.f32 %v1835, 1.442695
    %v1895 = vpow.pop %v1894
    %v1896 = vmul.f32 %v1836, 1.442695
    %v1897 = vpow.pop %v1896
    %v1898 = vmul.f32 %v1837, 1.442695
    %v1899 = vpow.pop %v1898
    %v1900 = vmul.f32 %v1838, 1.442695
    %v1901 = vpow.pop %v1900
    %v1902 = vmul.f32 %v1839, 1.442695
    %v1903 = vpow.pop %v1902
    %v1904 = vadd.f32 %v1841, 1.0
    %v1905 = vadd.f32 %v1843, 1.0
    %v1906 = vadd.f32 %v1845, 1.0
    %v1907 = vadd.f32 %v1847, 1.0
    %v1908 = vadd.f32 %v1849, 1.0
    %v1909 = vadd.f32 %v1851, 1.0
    %v1910 = vadd.f32 %v1853, 1.0
    %v1911 = vadd.f32 %v1855, 1.0
    %v1912 = vadd.f32 %v1857, 1.0
    %v1913 = vadd.f32 %v1859, 1.0
    %v1914 = vadd.f32 %v1861, 1.0
    %v1915 = vadd.f32 %v1863, 1.0
    %v1916 = vadd.f32 %v1865, 1.0
    %v1917 = vadd.f32 %v1867, 1.0
    %v1918 = vadd.f32 %v1869, 1.0
    %v1919 = vadd.f32 %v1871, 1.0
    %v1920 = vadd.f32 %v1873, 1.0
    %v1921 = vadd.f32 %v1875, 1.0
    %v1922 = vadd.f32 %v1877, 1.0
    %v1923 = vadd.f32 %v1879, 1.0
    %v1924 = vadd.f32 %v1881, 1.0
    %v1925 = vadd.f32 %v1883, 1.0
    %v1926 = vadd.f32 %v1885, 1.0
    %v1927 = vadd.f32 %v1887, 1.0
    %v1928 = vadd.f32 %v1889, 1.0
    %v1929 = vadd.f32 %v1891, 1.0
    %v1930 = vadd.f32 %v1893, 1.0
    %v1931 = vadd.f32 %v1895, 1.0
    %v1932 = vadd.f32 %v1897, 1.0
    %v1933 = vadd.f32 %v1899, 1.0
    %v1934 = vadd.f32 %v1901, 1.0
    %v1935 = vadd.f32 %v1903, 1.0
    %v1936 = vrcp.pop %v1904
    %v1937 = vmul.f32 1.0, %v1936
    %v1938 = vrcp.pop %v1905
    %v1939 = vmul.f32 1.0, %v1938
    %v1940 = vrcp.pop %v1906
    %v1941 = vmul.f32 1.0, %v1940
    %v1942 = vrcp.pop %v1907
    %v1943 = vmul.f32 1.0, %v1942
    %v1944 = vrcp.pop %v1908
    %v1945 = vmul.f32 1.0, %v1944
    %v1946 = vrcp.pop %v1909
    %v1947 = vmul.f32 1.0, %v1946
    %v1948 = vrcp.pop %v1910
    %v1949 = vmul.f32 1.0, %v1948
    %v1950 = vrcp.pop %v1911
    %v1951 = vmul.f32 1.0, %v1950
    %v1952 = vrcp.pop %v1912
    %v1953 = vmul.f32 1.0, %v1952
    %v1954 = vrcp.pop %v1913
    %v1955 = vmul.f32 1.0, %v1954
    %v1956 = vrcp.pop %v1914
    %v1957 = vmul.f32 1.0, %v1956
    %v1958 = vrcp.pop %v1915
    %v1959 = vmul.f32 1.0, %v1958
    %v1960 = vrcp.pop %v1916
    %v1961 = vmul.f32 1.0, %v1960
    %v1962 = vrcp.pop %v1917
    %v1963 = vmul.f32 1.0, %v1962
    %v1964 = vrcp.pop %v1918
    %v1965 = vmul.f32 1.0, %v1964
    %v1966 = vrcp.pop %v1919
    %v1967 = vmul.f32 1.0, %v1966
    %v1968 = vrcp.pop %v1920
    %v1969 = vmul.f32 1.0, %v1968
    %v1970 = vrcp.pop %v1921
    %v1971 = vmul.f32 1.0, %v1970
    %v1972 = vrcp.pop %v1922
    %v1973 = vmul.f32 1.0, %v1972
    %v1974 = vrcp.pop %v1923
    %v1975 = vmul.f32 1.0, %v1974
    %v1976 = vrcp.pop %v1924
    %v1977 = vmul.f32 1.0, %v1976
    %v1978 = vrcp.pop %v1925
    %v1979 = vmul.f32 1.0, %v1978
    %v1980 = vrcp.pop %v1926
    %v1981 = vmul.f32 1.0, %v1980
    %v1982 = vrcp.pop %v1927
    %v1983 = vmul.f32 1.0, %v1982
    %v1984 = vrcp.pop %v1928
    %v1985 = vmul.f32 1.0, %v1984
    %v1986 = vrcp.pop %v1929
    %v1987 = vmul.f32 1.0, %v1986
    %v1988 = vrcp.pop %v1930
    %v1989 = vmul.f32 1.0, %v1988
    %v1990 = vrcp.pop %v1931
    %v1991 = vmul.f32 1.0, %v1990
    %v1992 = vrcp.pop %v1932
    %v1993 = vmul.f32 1.0, %v1992
    %v1994 = vrcp.pop %v1933
    %v1995 = vmul.f32 1.0, %v1994
    %v1996 = vrcp.pop %v1934
    %v1997 = vmul.f32 1.0, %v1996
    %v1998 = vrcp.pop %v1935
    %v1999 = vmul.f32 1.0, %v1998
    %v2000 = vpack.c.bf16 %v1939, %v1937
    %v2001 = vpack.c.bf16 %v1943, %v1941
    %v2002 = vpack.c.bf16 %v1947, %v1945
    %v2003 = vpack.c.bf16 %v1951, %v1949
    %v2004 = vpack.c.bf16 %v1955, %v1953
    %v2005 = vpack.c.bf16 %v1959, %v1957
    %v2006 = vpack.c.bf16 %v1963, %v1961
    %v2007 = vpack.c.bf16 %v1967, %v1965
    %v2008 = vpack.c.bf16 %v1971, %v1969
    %v2009 = vpack.c.bf16 %v1975, %v1973
    %v2010 = vpack.c.bf16 %v1979, %v1977
    %v2011 = vpack.c.bf16 %v1983, %v1981
    %v2012 = vpack.c.bf16 %v1987, %v1985
    %v2013 = vpack.c.bf16 %v1991, %v1989
    %v2014 = vpack.c.bf16 %v1995, %v1993
    %v2015 = vpack.c.bf16 %v1999, %v1997
    %v2016 = vld [vmem:[%s3] sm:$0xf]
    %v2017 = vld [vmem:[%s3 + $0x4] sm:$0xf]
    %v2018 = vld [vmem:[%s3 + $0x8] sm:$0xf]
    %v2019 = vld [vmem:[%s3 + $0xc] sm:$0xf]
    %v2020 = vld [vmem:[%s3 + $0x10] sm:$0xf]
    %v2021 = vld [vmem:[%s3 + $0x14] sm:$0xf]
    %v2022 = vld [vmem:[%s3 + $0x18] sm:$0xf]
    %v2023 = vld [vmem:[%s3 + $0x1c] sm:$0xf]
    %v2024 = vld [vmem:[%s3 + $0x20] sm:$0xf]
    %v2025 = vld [vmem:[%s3 + $0x24] sm:$0xf]
    %v2026 = vld [vmem:[%s3 + $0x28] sm:$0xf]
    %v2027 = vld [vmem:[%s3 + $0x2c] sm:$0xf]
    %v2028 = vld [vmem:[%s3 + $0x30] sm:$0xf]
    %v2029 = vld [vmem:[%s3 + $0x34] sm:$0xf]
    %v2030 = vld [vmem:[%s3 + $0x38] sm:$0xf]
    %v2031 = vld [vmem:[%s3 + $0x3c] sm:$0xf]
    %v2032 = vld [vmem:[%s4] sm:$0x1]
    %v2034 = vlaneseq
    %v2035 = vshrl.u32 %v2034, 7
    %v2036 = vsub.s32 0, %v2035
    %v2037 = vrot.slane %v2032, %v2036
    %v2055 = vunpack.c.l.b16 %v2016
    %v2056 = vunpack.c.l.b16 %v2017
    %v2057 = vunpack.c.l.b16 %v2018
    %v2058 = vunpack.c.l.b16 %v2019
    %v2059 = vunpack.c.l.b16 %v2020
    %v2060 = vunpack.c.l.b16 %v2021
    %v2061 = vunpack.c.l.b16 %v2022
    %v2062 = vunpack.c.l.b16 %v2023
    %v2063 = vunpack.c.l.b16 %v2024
    %v2064 = vunpack.c.l.b16 %v2025
    %v2065 = vunpack.c.l.b16 %v2026
    %v2066 = vunpack.c.l.b16 %v2027
    %v2067 = vunpack.c.l.b16 %v2028
    %v2068 = vunpack.c.l.b16 %v2029
    %v2069 = vunpack.c.l.b16 %v2030
    %v2070 = vunpack.c.l.b16 %v2031
    %v2071 = vpack.c.b16 %v2056, %v2055
    %v2072 = vpack.c.b16 %v2058, %v2057
    %v2073 = vpack.c.b16 %v2060, %v2059
    %v2074 = vpack.c.b16 %v2062, %v2061
    %v2075 = vpack.c.b16 %v2064, %v2063
    %v2076 = vpack.c.b16 %v2066, %v2065
    %v2077 = vpack.c.b16 %v2068, %v2067
    %v2078 = vpack.c.b16 %v2070, %v2069
    %2087 = vmatprep.subr.bf16.mxu0 0
    %2088 = vmatpush1.bf16.msra.mxu0 %v2071
    %2089 = vmatprep.subr.bf16.mxu0 0
    %2090 = vmatpush1.bf16.msra.mxu0 %v2072
    %2091 = vmatprep.subr.bf16.mxu0 0
    %2092 = vmatpush1.bf16.msra.mxu0 %v2073
    %2093 = vmatprep.subr.bf16.mxu0 0
    %2094 = vmatpush1.bf16.msra.mxu0 %v2074
    %2095 = vmatprep.subr.bf16.mxu0 0
    %2096 = vmatpush1.bf16.msra.mxu0 %v2075
    %2097 = vmatprep.subr.bf16.mxu0 0
    %2098 = vmatpush1.bf16.msra.mxu0 %v2076
    %2099 = vmatprep.subr.bf16.mxu0 0
    %2100 = vmatpush1.bf16.msra.mxu0 %v2077
    %2101 = vmatprep.subr.bf16.mxu0 0
    %2102 = vmatpush1.bf16.msra.mxu0 %v2078
    %2103 = vmatprep.subr.bf16.mxu0 0
    %2104 = vmatpush1.bf16.msra.mxu0 0
    %2105 = vmatprep.subr.bf16.mxu0 0
    %2106 = vmatpush1.bf16.msra.mxu0 0
    %2107 = vmatprep.subr.bf16.mxu0 0
    %2108 = vmatpush1.bf16.msra.mxu0 0
    %2109 = vmatprep.subr.bf16.mxu0 0
    %2110 = vmatpush1.bf16.msra.mxu0 0
    %2111 = vmatprep.subr.bf16.mxu0 0
    %2112 = vmatpush1.bf16.msra.mxu0 0
    %2113 = vmatprep.subr.bf16.mxu0 0
    %2114 = vmatpush1.bf16.msra.mxu0 0
    %2115 = vmatprep.subr.bf16.mxu0 0
    %2116 = vmatpush1.bf16.msra.mxu0 0
    %2117 = vmatprep.subr.bf16.mxu0 0
    %2118 = vmatpush1.bf16.msra.mxu0 0
    %2119 = vmatprep.mubr.bf16.mxu0 0
    %2120 = vmatmul.mubr.bf16.gmra.mrb[0].mxu0 %v2000
    %v2121 = vpop.f32.mrb[0].mxu0
    %v2122 = vadd.f32 %v2037, %v2121
    %v2123 = vpop.f32.mrb[0].mxu0
    %v2124 = vpop.f32.mrb[0].mxu0
    %v2125 = vadd.f32 %v2037, %v2124
    %v2126 = vpop.f32.mrb[0].mxu0
    %2127 = vmatprep.mubr.bf16.mxu0 0
    %2128 = vmatmul.mubr.bf16.gmra.mrb[0].mxu0 %v2001
    %v2129 = vpop.f32.mrb[0].mxu0
    %v2130 = vadd.f32 %v2037, %v2129
    %v2131 = vpop.f32.mrb[0].mxu0
    %v2132 = vpop.f32.mrb[0].mxu0
    %v2133 = vadd.f32 %v2037, %v2132
    %v2134 = vpop.f32.mrb[0].mxu0
    %2135 = vmatprep.mubr.bf16.mxu0 0
    %2136 = vmatmul.mubr.bf16.gmra.mrb[0].mxu0 %v2002
    %v2137 = vpop.f32.mrb[0].mxu0
    %v2138 = vadd.f32 %v2037, %v2137
    %v2139 = vpop.f32.mrb[0].mxu0
    %v2140 = vpop.f32.mrb[0].mxu0
    %v2141 = vadd.f32 %v2037, %v2140
    %v2142 = vpop.f32.mrb[0].mxu0
    %2143 = vmatprep.mubr.bf16.mxu0 0
    %2144 = vmatmul.mubr.bf16.gmra.mrb[0].mxu0 %v2003
    %v2145 = vpop.f32.mrb[0].mxu0
    %v2146 = vadd.f32 %v2037, %v2145
    %v2147 = vpop.f32.mrb[0].mxu0
    %v2148 = vpop.f32.mrb[0].mxu0
    %v2149 = vadd.f32 %v2037, %v2148
    %v2150 = vpop.f32.mrb[0].mxu0
    %2151 = vmatprep.mubr.bf16.mxu0 0
    %2152 = vmatmul.mubr.bf16.gmra.mrb[0].mxu0 %v2004
    %v2153 = vpop.f32.mrb[0].mxu0
    %v2154 = vadd.f32 %v2037, %v2153
    %v2155 = vpop.f32.mrb[0].mxu0
    %v2156 = vpop.f32.mrb[0].mxu0
    %v2157 = vadd.f32 %v2037, %v2156
    %v2158 = vpop.f32.mrb[0].mxu0
    %2159 = vmatprep.mubr.bf16.mxu0 0
    %2160 = vmatmul.mubr.bf16.gmra.mrb[0].mxu0 %v2005
    %v2161 = vpop.f32.mrb[0].mxu0
    %v2162 = vadd.f32 %v2037, %v2161
    %v2163 = vpop.f32.mrb[0].mxu0
    %v2164 = vpop.f32.mrb[0].mxu0
    %v2165 = vadd.f32 %v2037, %v2164
    %v2166 = vpop.f32.mrb[0].mxu0
    %2167 = vmatprep.mubr.bf16.mxu0 0
    %2168 = vmatmul.mubr.bf16.gmra.mrb[0].mxu0 %v2006
    %v2169 = vpop.f32.mrb[0].mxu0
    %v2170 = vadd.f32 %v2037, %v2169
    %v2171 = vpop.f32.mrb[0].mxu0
    %v2172 = vpop.f32.mrb[0].mxu0
    %v2173 = vadd.f32 %v2037, %v2172
    %v2174 = vpop.f32.mrb[0].mxu0
    %2175 = vmatprep.mubr.bf16.mxu0 0
    %2176 = vmatmul.mubr.bf16.gmra.mrb[0].mxu0 %v2007
    %v2177 = vpop.f32.mrb[0].mxu0
    %v2178 = vadd.f32 %v2037, %v2177
    %v2179 = vpop.f32.mrb[0].mxu0
    %v2180 = vpop.f32.mrb[0].mxu0
    %v2181 = vadd.f32 %v2037, %v2180
    %v2182 = vpop.f32.mrb[0].mxu0
    %2183 = vmatprep.mubr.bf16.mxu0 0
    %2184 = vmatmul.mubr.bf16.gmra.mrb[0].mxu0 %v2008
    %v2185 = vpop.f32.mrb[0].mxu0
    %v2186 = vadd.f32 %v2037, %v2185
    %v2187 = vpop.f32.mrb[0].mxu0
    %v2188 = vpop.f32.mrb[0].mxu0
    %v2189 = vadd.f32 %v2037, %v2188
    %v2190 = vpop.f32.mrb[0].mxu0
    %2191 = vmatprep.mubr.bf16.mxu0 0
    %2192 = vmatmul.mubr.bf16.gmra.mrb[0].mxu0 %v2009
    %v2193 = vpop.f32.mrb[0].mxu0
    %v2194 = vadd.f32 %v2037, %v2193
    %v2195 = vpop.f32.mrb[0].mxu0
    %v2196 = vpop.f32.mrb[0].mxu0
    %v2197 = vadd.f32 %v2037, %v2196
    %v2198 = vpop.f32.mrb[0].mxu0
    %2199 = vmatprep.mubr.bf16.mxu0 0
    %2200 = vmatmul.mubr.bf16.gmra.mrb[0].mxu0 %v2010
    %v2201 = vpop.f32.mrb[0].mxu0
    %v2202 = vadd.f32 %v2037, %v2201
    %v2203 = vpop.f32.mrb[0].mxu0
    %v2204 = vpop.f32.mrb[0].mxu0
    %v2205 = vadd.f32 %v2037, %v2204
    %v2206 = vpop.f32.mrb[0].mxu0
    %2207 = vmatprep.mubr.bf16.mxu0 0
    %2208 = vmatmul.mubr.bf16.gmra.mrb[0].mxu0 %v2011
    %v2209 = vpop.f32.mrb[0].mxu0
    %v2210 = vadd.f32 %v2037, %v2209
    %v2211 = vpop.f32.mrb[0].mxu0
    %v2212 = vpop.f32.mrb[0].mxu0
    %v2213 = vadd.f32 %v2037, %v2212
    %v2214 = vpop.f32.mrb[0].mxu0
    %2215 = vmatprep.mubr.bf16.mxu0 0
    %2216 = vmatmul.mubr.bf16.gmra.mrb[0].mxu0 %v2012
    %v2217 = vpop.f32.mrb[0].mxu0
    %v2218 = vadd.f32 %v2037, %v2217
    %v2219 = vpop.f32.mrb[0].mxu0
    %v2220 = vpop.f32.mrb[0].mxu0
    %v2221 = vadd.f32 %v2037, %v2220
    %v2222 = vpop.f32.mrb[0].mxu0
    %2223 = vmatprep.mubr.bf16.mxu0 0
    %2224 = vmatmul.mubr.bf16.gmra.mrb[0].mxu0 %v2013
    %v2225 = vpop.f32.mrb[0].mxu0
    %v2226 = vadd.f32 %v2037, %v2225
    %v2227 = vpop.f32.mrb[0].mxu0
    %v2228 = vpop.f32.mrb[0].mxu0
    %v2229 = vadd.f32 %v2037, %v2228
    %v2230 = vpop.f32.mrb[0].mxu0
    %2231 = vmatprep.mubr.bf16.mxu0 0
    %2232 = vmatmul.mubr.bf16.gmra.mrb[0].mxu0 %v2014
    %v2233 = vpop.f32.mrb[0].mxu0
    %v2234 = vadd.f32 %v2037, %v2233
    %v2235 = vpop.f32.mrb[0].mxu0
    %v2236 = vpop.f32.mrb[0].mxu0
    %v2237 = vadd.f32 %v2037, %v2236
    %v2238 = vpop.f32.mrb[0].mxu0
    %2239 = vmatprep.mubr.bf16.mxu0 0
    %2240 = vmatmul.mubr.bf16.gmra.mrb[0].mxu0 %v2015
    %v2241 = vpop.f32.mrb[0].mxu0
    %v2242 = vadd.f32 %v2037, %v2241
    %v2243 = vpop.f32.mrb[0].mxu0
    %v2244 = vpop.f32.mrb[0].mxu0
    %v2245 = vadd.f32 %v2037, %v2244
    %v2246 = vpop.f32.mrb[0].mxu0
    %2247 = vdwg.mxu0
    %v2248 = vxor.u32 %v2122, 2147483648
    %v2249 = vxor.u32 %v2125, 2147483648
    %v2250 = vxor.u32 %v2130, 2147483648
    %v2251 = vxor.u32 %v2133, 2147483648
    %v2252 = vxor.u32 %v2138, 2147483648
    %v2253 = vxor.u32 %v2141, 2147483648
    %v2254 = vxor.u32 %v2146, 2147483648
    %v2255 = vxor.u32 %v2149, 2147483648
    %v2256 = vxor.u32 %v2154, 2147483648
    %v2257 = vxor.u32 %v2157, 2147483648
    %v2258 = vxor.u32 %v2162, 2147483648
    %v2259 = vxor.u32 %v2165, 2147483648
    %v2260 = vxor.u32 %v2170, 2147483648
    %v2261 = vxor.u32 %v2173, 2147483648
    %v2262 = vxor.u32 %v2178, 2147483648
    %v2263 = vxor.u32 %v2181, 2147483648
    %v2264 = vxor.u32 %v2186, 2147483648
    %v2265 = vxor.u32 %v2189, 2147483648
    %v2266 = vxor.u32 %v2194, 2147483648
    %v2267 = vxor.u32 %v2197, 2147483648
    %v2268 = vxor.u32 %v2202, 2147483648
    %v2269 = vxor.u32 %v2205, 2147483648
    %v2270 = vxor.u32 %v2210, 2147483648
    %v2271 = vxor.u32 %v2213, 2147483648
    %v2272 = vxor.u32 %v2218, 2147483648
    %v2273 = vxor.u32 %v2221, 2147483648
    %v2274 = vxor.u32 %v2226, 2147483648
    %v2275 = vxor.u32 %v2229, 2147483648
    %v2276 = vxor.u32 %v2234, 2147483648
    %v2277 = vxor.u32 %v2237, 2147483648
    %v2278 = vxor.u32 %v2242, 2147483648
    %v2279 = vxor.u32 %v2245, 2147483648
    %v2280 = vmul.f32 %v2248, 1.442695
    %v2281 = vpow.pop %v2280
    %v2282 = vmul.f32 %v2249, 1.442695
    %v2283 = vpow.pop %v2282
    %v2284 = vmul.f32 %v2250, 1.442695
    %v2285 = vpow.pop %v2284
    %v2286 = vmul.f32 %v2251, 1.442695
    %v2287 = vpow.pop %v2286
    %v2288 = vmul.f32 %v2252, 1.442695
    %v2289 = vpow.pop %v2288
    %v2290 = vmul.f32 %v2253, 1.442695
    %v2291 = vpow.pop %v2290
    %v2292 = vmul.f32 %v2254, 1.442695
    %v2293 = vpow.pop %v2292
    %v2294 = vmul.f32 %v2255, 1.442695
    %v2295 = vpow.pop %v2294
    %v2296 = vmul.f32 %v2256, 1.442695
    %v2297 = vpow.pop %v2296
    %v2298 = vmul.f32 %v2257, 1.442695
    %v2299 = vpow.pop %v2298
    %v2300 = vmul.f32 %v2258, 1.442695
    %v2301 = vpow.pop %v2300
    %v2302 = vmul.f32 %v2259, 1.442695
    %v2303 = vpow.pop %v2302
    %v2304 = vmul.f32 %v2260, 1.442695
    %v2305 = vpow.pop %v2304
    %v2306 = vmul.f32 %v2261, 1.442695
    %v2307 = vpow.pop %v2306
    %v2308 = vmul.f32 %v2262, 1.442695
    %v2309 = vpow.pop %v2308
    %v2310 = vmul.f32 %v2263, 1.442695
    %v2311 = vpow.pop %v2310
    %v2312 = vmul.f32 %v2264, 1.442695
    %v2313 = vpow.pop %v2312
    %v2314 = vmul.f32 %v2265, 1.442695
    %v2315 = vpow.pop %v2314
    %v2316 = vmul.f32 %v2266, 1.442695
    %v2317 = vpow.pop %v2316
    %v2318 = vmul.f32 %v2267, 1.442695
    %v2319 = vpow.pop %v2318
    %v2320 = vmul.f32 %v2268, 1.442695
    %v2321 = vpow.pop %v2320
    %v2322 = vmul.f32 %v2269, 1.442695
    %v2323 = vpow.pop %v2322
    %v2324 = vmul.f32 %v2270, 1.442695
    %v2325 = vpow.pop %v2324
    %v2326 = vmul.f32 %v2271, 1.442695
    %v2327 = vpow.pop %v2326
    %v2328 = vmul.f32 %v2272, 1.442695
    %v2329 = vpow.pop %v2328
    %v2330 = vmul.f32 %v2273, 1.442695
    %v2331 = vpow.pop %v2330
    %v2332 = vmul.f32 %v2274, 1.442695
    %v2333 = vpow.pop %v2332
    %v2334 = vmul.f32 %v2275, 1.442695
    %v2335 = vpow.pop %v2334
    %v2336 = vmul.f32 %v2276, 1.442695
    %v2337 = vpow.pop %v2336
    %v2338 = vmul.f32 %v2277, 1.442695
    %v2339 = vpow.pop %v2338
    %v2340 = vmul.f32 %v2278, 1.442695
    %v2341 = vpow.pop %v2340
    %v2342 = vmul.f32 %v2279, 1.442695
    %v2343 = vpow.pop %v2342
    %v2344 = vadd.f32 %v2281, 1.0
    %v2345 = vadd.f32 %v2283, 1.0
    %v2346 = vadd.f32 %v2285, 1.0
    %v2347 = vadd.f32 %v2287, 1.0
    %v2348 = vadd.f32 %v2289, 1.0
    %v2349 = vadd.f32 %v2291, 1.0
    %v2350 = vadd.f32 %v2293, 1.0
    %v2351 = vadd.f32 %v2295, 1.0
    %v2352 = vadd.f32 %v2297, 1.0
    %v2353 = vadd.f32 %v2299, 1.0
    %v2354 = vadd.f32 %v2301, 1.0
    %v2355 = vadd.f32 %v2303, 1.0
    %v2356 = vadd.f32 %v2305, 1.0
    %v2357 = vadd.f32 %v2307, 1.0
    %v2358 = vadd.f32 %v2309, 1.0
    %v2359 = vadd.f32 %v2311, 1.0
    %v2360 = vadd.f32 %v2313, 1.0
    %v2361 = vadd.f32 %v2315, 1.0
    %v2362 = vadd.f32 %v2317, 1.0
    %v2363 = vadd.f32 %v2319, 1.0
    %v2364 = vadd.f32 %v2321, 1.0
    %v2365 = vadd.f32 %v2323, 1.0
    %v2366 = vadd.f32 %v2325, 1.0
    %v2367 = vadd.f32 %v2327, 1.0
    %v2368 = vadd.f32 %v2329, 1.0
    %v2369 = vadd.f32 %v2331, 1.0
    %v2370 = vadd.f32 %v2333, 1.0
    %v2371 = vadd.f32 %v2335, 1.0
    %v2372 = vadd.f32 %v2337, 1.0
    %v2373 = vadd.f32 %v2339, 1.0
    %v2374 = vadd.f32 %v2341, 1.0
    %v2375 = vadd.f32 %v2343, 1.0
    %v2376 = vrcp.pop %v2344
    %v2377 = vmul.f32 1.0, %v2376
    %v2378 = vrcp.pop %v2345
    %v2379 = vmul.f32 1.0, %v2378
    %v2380 = vrcp.pop %v2346
    %v2381 = vmul.f32 1.0, %v2380
    %v2382 = vrcp.pop %v2347
    %v2383 = vmul.f32 1.0, %v2382
    %v2384 = vrcp.pop %v2348
    %v2385 = vmul.f32 1.0, %v2384
    %v2386 = vrcp.pop %v2349
    %v2387 = vmul.f32 1.0, %v2386
    %v2388 = vrcp.pop %v2350
    %v2389 = vmul.f32 1.0, %v2388
    %v2390 = vrcp.pop %v2351
    %v2391 = vmul.f32 1.0, %v2390
    %v2392 = vrcp.pop %v2352
    %v2393 = vmul.f32 1.0, %v2392
    %v2394 = vrcp.pop %v2353
    %v2395 = vmul.f32 1.0, %v2394
    %v2396 = vrcp.pop %v2354
    %v2397 = vmul.f32 1.0, %v2396
    %v2398 = vrcp.pop %v2355
    %v2399 = vmul.f32 1.0, %v2398
    %v2400 = vrcp.pop %v2356
    %v2401 = vmul.f32 1.0, %v2400
    %v2402 = vrcp.pop %v2357
    %v2403 = vmul.f32 1.0, %v2402
    %v2404 = vrcp.pop %v2358
    %v2405 = vmul.f32 1.0, %v2404
    %v2406 = vrcp.pop %v2359
    %v2407 = vmul.f32 1.0, %v2406
    %v2408 = vrcp.pop %v2360
    %v2409 = vmul.f32 1.0, %v2408
    %v2410 = vrcp.pop %v2361
    %v2411 = vmul.f32 1.0, %v2410
    %v2412 = vrcp.pop %v2362
    %v2413 = vmul.f32 1.0, %v2412
    %v2414 = vrcp.pop %v2363
    %v2415 = vmul.f32 1.0, %v2414
    %v2416 = vrcp.pop %v2364
    %v2417 = vmul.f32 1.0, %v2416
    %v2418 = vrcp.pop %v2365
    %v2419 = vmul.f32 1.0, %v2418
    %v2420 = vrcp.pop %v2366
    %v2421 = vmul.f32 1.0, %v2420
    %v2422 = vrcp.pop %v2367
    %v2423 = vmul.f32 1.0, %v2422
    %v2424 = vrcp.pop %v2368
    %v2425 = vmul.f32 1.0, %v2424
    %v2426 = vrcp.pop %v2369
    %v2427 = vmul.f32 1.0, %v2426
    %v2428 = vrcp.pop %v2370
    %v2429 = vmul.f32 1.0, %v2428
    %v2430 = vrcp.pop %v2371
    %v2431 = vmul.f32 1.0, %v2430
    %v2432 = vrcp.pop %v2372
    %v2433 = vmul.f32 1.0, %v2432
    %v2434 = vrcp.pop %v2373
    %v2435 = vmul.f32 1.0, %v2434
    %v2436 = vrcp.pop %v2374
    %v2437 = vmul.f32 1.0, %v2436
    %v2438 = vrcp.pop %v2375
    %v2439 = vmul.f32 1.0, %v2438
    %v2440 = vpack.c.bf16 %v2379, %v2377
    %v2441 = vpack.c.bf16 %v2383, %v2381
    %v2442 = vpack.c.bf16 %v2387, %v2385
    %v2443 = vpack.c.bf16 %v2391, %v2389
    %v2444 = vpack.c.bf16 %v2395, %v2393
    %v2445 = vpack.c.bf16 %v2399, %v2397
    %v2446 = vpack.c.bf16 %v2403, %v2401
    %v2447 = vpack.c.bf16 %v2407, %v2405
    %v2448 = vpack.c.bf16 %v2411, %v2409
    %v2449 = vpack.c.bf16 %v2415, %v2413
    %v2450 = vpack.c.bf16 %v2419, %v2417
    %v2451 = vpack.c.bf16 %v2423, %v2421
    %v2452 = vpack.c.bf16 %v2427, %v2425
    %v2453 = vpack.c.bf16 %v2431, %v2429
    %v2454 = vpack.c.bf16 %v2435, %v2433
    %v2455 = vpack.c.bf16 %v2439, %v2437
    %v2456 = vld [vmem:[%s5] sm:$0xf]
    %v2457 = vld [vmem:[%s5 + $0x4] sm:$0xf]
    %v2458 = vld [vmem:[%s5 + $0x8] sm:$0xf]
    %v2459 = vld [vmem:[%s5 + $0xc] sm:$0xf]
    %v2460 = vld [vmem:[%s5 + $0x10] sm:$0xf]
    %v2461 = vld [vmem:[%s5 + $0x14] sm:$0xf]
    %v2462 = vld [vmem:[%s5 + $0x18] sm:$0xf]
    %v2463 = vld [vmem:[%s5 + $0x1c] sm:$0xf]
    %v2464 = vld [vmem:[%s5 + $0x20] sm:$0xf]
    %v2465 = vld [vmem:[%s5 + $0x24] sm:$0xf]
    %v2466 = vld [vmem:[%s5 + $0x28] sm:$0xf]
    %v2467 = vld [vmem:[%s5 + $0x2c] sm:$0xf]
    %v2468 = vld [vmem:[%s5 + $0x30] sm:$0xf]
    %v2469 = vld [vmem:[%s5 + $0x34] sm:$0xf]
    %v2470 = vld [vmem:[%s5 + $0x38] sm:$0xf]
    %v2471 = vld [vmem:[%s5 + $0x3c] sm:$0xf]
    %v2472 = vld [vmem:[%s6] sm:$0x1]
    %v2474 = vlaneseq
    %v2475 = vshrl.u32 %v2474, 7
    %v2476 = vsub.s32 0, %v2475
    %v2477 = vrot.slane %v2472, %v2476
    %v2495 = vunpack.c.l.b16 %v2456
    %v2496 = vunpack.c.l.b16 %v2457
    %v2497 = vunpack.c.l.b16 %v2458
    %v2498 = vunpack.c.l.b16 %v2459
    %v2499 = vunpack.c.l.b16 %v2460
    %v2500 = vunpack.c.l.b16 %v2461
    %v2501 = vunpack.c.l.b16 %v2462
    %v2502 = vunpack.c.l.b16 %v2463
    %v2503 = vunpack.c.l.b16 %v2464
    %v2504 = vunpack.c.l.b16 %v2465
    %v2505 = vunpack.c.l.b16 %v2466
    %v2506 = vunpack.c.l.b16 %v2467
    %v2507 = vunpack.c.l.b16 %v2468
    %v2508 = vunpack.c.l.b16 %v2469
    %v2509 = vunpack.c.l.b16 %v2470
    %v2510 = vunpack.c.l.b16 %v2471
    %v2511 = vpack.c.b16 %v2496, %v2495
    %v2512 = vpack.c.b16 %v2498, %v2497
    %v2513 = vpack.c.b16 %v2500, %v2499
    %v2514 = vpack.c.b16 %v2502, %v2501
    %v2515 = vpack.c.b16 %v2504, %v2503
    %v2516 = vpack.c.b16 %v2506, %v2505
    %v2517 = vpack.c.b16 %v2508, %v2507
    %v2518 = vpack.c.b16 %v2510, %v2509
    %2527 = vmatprep.subr.bf16.mxu0 0
    %2528 = vmatpush1.bf16.msra.mxu0 %v2511
    %2529 = vmatprep.subr.bf16.mxu0 0
    %2530 = vmatpush1.bf16.msra.mxu0 %v2512
    %2531 = vmatprep.subr.bf16.mxu0 0
    %2532 = vmatpush1.bf16.msra.mxu0 %v2513
    %2533 = vmatprep.subr.bf16.mxu0 0
    %2534 = vmatpush1.bf16.msra.mxu0 %v2514
    %2535 = vmatprep.subr.bf16.mxu0 0
    %2536 = vmatpush1.bf16.msra.mxu0 %v2515
    %2537 = vmatprep.subr.bf16.mxu0 0
    %2538 = vmatpush1.bf16.msra.mxu0 %v2516
    %2539 = vmatprep.subr.bf16.mxu0 0
    %2540 = vmatpush1.bf16.msra.mxu0 %v2517
    %2541 = vmatprep.subr.bf16.mxu0 0
    %2542 = vmatpush1.bf16.msra.mxu0 %v2518
    %2543 = vmatprep.subr.bf16.mxu0 0
    %2544 = vmatpush1.bf16.msra.mxu0 0
    %2545 = vmatprep.subr.bf16.mxu0 0
    %2546 = vmatpush1.bf16.msra.mxu0 0
    %2547 = vmatprep.subr.bf16.mxu0 0
    %2548 = vmatpush1.bf16.msra.mxu0 0
    %2549 = vmatprep.subr.bf16.mxu0 0
    %2550 = vmatpush1.bf16.msra.mxu0 0
    %2551 = vmatprep.subr.bf16.mxu0 0
    %2552 = vmatpush1.bf16.msra.mxu0 0
    %2553 = vmatprep.subr.bf16.mxu0 0
    %2554 = vmatpush1.bf16.msra.mxu0 0
    %2555 = vmatprep.subr.bf16.mxu0 0
    %2556 = vmatpush1.bf16.msra.mxu0 0
    %2557 = vmatprep.subr.bf16.mxu0 0
    %2558 = vmatpush1.bf16.msra.mxu0 0
    %2559 = vmatprep.mubr.bf16.mxu0 0
    %2560 = vmatmul.mubr.bf16.gmra.mrb[0].mxu0 %v2440
    %v2561 = vpop.f32.mrb[0].mxu0
    %v2562 = vadd.f32 %v2477, %v2561
    %v2563 = vpop.f32.mrb[0].mxu0
    %v2564 = vpop.f32.mrb[0].mxu0
    %v2565 = vadd.f32 %v2477, %v2564
    %v2566 = vpop.f32.mrb[0].mxu0
    %2567 = vmatprep.mubr.bf16.mxu0 0
    %2568 = vmatmul.mubr.bf16.gmra.mrb[0].mxu0 %v2441
    %v2569 = vpop.f32.mrb[0].mxu0
    %v2570 = vadd.f32 %v2477, %v2569
    %v2571 = vpop.f32.mrb[0].mxu0
    %v2572 = vpop.f32.mrb[0].mxu0
    %v2573 = vadd.f32 %v2477, %v2572
    %v2574 = vpop.f32.mrb[0].mxu0
    %2575 = vmatprep.mubr.bf16.mxu0 0
    %2576 = vmatmul.mubr.bf16.gmra.mrb[0].mxu0 %v2442
    %v2577 = vpop.f32.mrb[0].mxu0
    %v2578 = vadd.f32 %v2477, %v2577
    %v2579 = vpop.f32.mrb[0].mxu0
    %v2580 = vpop.f32.mrb[0].mxu0
    %v2581 = vadd.f32 %v2477, %v2580
    %v2582 = vpop.f32.mrb[0].mxu0
    %2583 = vmatprep.mubr.bf16.mxu0 0
    %2584 = vmatmul.mubr.bf16.gmra.mrb[0].mxu0 %v2443
    %v2585 = vpop.f32.mrb[0].mxu0
    %v2586 = vadd.f32 %v2477, %v2585
    %v2587 = vpop.f32.mrb[0].mxu0
    %v2588 = vpop.f32.mrb[0].mxu0
    %v2589 = vadd.f32 %v2477, %v2588
    %v2590 = vpop.f32.mrb[0].mxu0
    %2591 = vmatprep.mubr.bf16.mxu0 0
    %2592 = vmatmul.mubr.bf16.gmra.mrb[0].mxu0 %v2444
    %v2593 = vpop.f32.mrb[0].mxu0
    %v2594 = vadd.f32 %v2477, %v2593
    %v2595 = vpop.f32.mrb[0].mxu0
    %v2596 = vpop.f32.mrb[0].mxu0
    %v2597 = vadd.f32 %v2477, %v2596
    %v2598 = vpop.f32.mrb[0].mxu0
    %2599 = vmatprep.mubr.bf16.mxu0 0
    %2600 = vmatmul.mubr.bf16.gmra.mrb[0].mxu0 %v2445
    %v2601 = vpop.f32.mrb[0].mxu0
    %v2602 = vadd.f32 %v2477, %v2601
    %v2603 = vpop.f32.mrb[0].mxu0
    %v2604 = vpop.f32.mrb[0].mxu0
    %v2605 = vadd.f32 %v2477, %v2604
    %v2606 = vpop.f32.mrb[0].mxu0
    %2607 = vmatprep.mubr.bf16.mxu0 0
    %2608 = vmatmul.mubr.bf16.gmra.mrb[0].mxu0 %v2446
    %v2609 = vpop.f32.mrb[0].mxu0
    %v2610 = vadd.f32 %v2477, %v2609
    %v2611 = vpop.f32.mrb[0].mxu0
    %v2612 = vpop.f32.mrb[0].mxu0
    %v2613 = vadd.f32 %v2477, %v2612
    %v2614 = vpop.f32.mrb[0].mxu0
    %2615 = vmatprep.mubr.bf16.mxu0 0
    %2616 = vmatmul.mubr.bf16.gmra.mrb[0].mxu0 %v2447
    %v2617 = vpop.f32.mrb[0].mxu0
    %v2618 = vadd.f32 %v2477, %v2617
    %v2619 = vpop.f32.mrb[0].mxu0
    %v2620 = vpop.f32.mrb[0].mxu0
    %v2621 = vadd.f32 %v2477, %v2620
    %v2622 = vpop.f32.mrb[0].mxu0
    %2623 = vmatprep.mubr.bf16.mxu0 0
    %2624 = vmatmul.mubr.bf16.gmra.mrb[0].mxu0 %v2448
    %v2625 = vpop.f32.mrb[0].mxu0
    %v2626 = vadd.f32 %v2477, %v2625
    %v2627 = vpop.f32.mrb[0].mxu0
    %v2628 = vpop.f32.mrb[0].mxu0
    %v2629 = vadd.f32 %v2477, %v2628
    %v2630 = vpop.f32.mrb[0].mxu0
    %2631 = vmatprep.mubr.bf16.mxu0 0
    %2632 = vmatmul.mubr.bf16.gmra.mrb[0].mxu0 %v2449
    %v2633 = vpop.f32.mrb[0].mxu0
    %v2634 = vadd.f32 %v2477, %v2633
    %v2635 = vpop.f32.mrb[0].mxu0
    %v2636 = vpop.f32.mrb[0].mxu0
    %v2637 = vadd.f32 %v2477, %v2636
    %v2638 = vpop.f32.mrb[0].mxu0
    %2639 = vmatprep.mubr.bf16.mxu0 0
    %2640 = vmatmul.mubr.bf16.gmra.mrb[0].mxu0 %v2450
    %v2641 = vpop.f32.mrb[0].mxu0
    %v2642 = vadd.f32 %v2477, %v2641
    %v2643 = vpop.f32.mrb[0].mxu0
    %v2644 = vpop.f32.mrb[0].mxu0
    %v2645 = vadd.f32 %v2477, %v2644
    %v2646 = vpop.f32.mrb[0].mxu0
    %2647 = vmatprep.mubr.bf16.mxu0 0
    %2648 = vmatmul.mubr.bf16.gmra.mrb[0].mxu0 %v2451
    %v2649 = vpop.f32.mrb[0].mxu0
    %v2650 = vadd.f32 %v2477, %v2649
    %v2651 = vpop.f32.mrb[0].mxu0
    %v2652 = vpop.f32.mrb[0].mxu0
    %v2653 = vadd.f32 %v2477, %v2652
    %v2654 = vpop.f32.mrb[0].mxu0
    %2655 = vmatprep.mubr.bf16.mxu0 0
    %2656 = vmatmul.mubr.bf16.gmra.mrb[0].mxu0 %v2452
    %v2657 = vpop.f32.mrb[0].mxu0
    %v2658 = vadd.f32 %v2477, %v2657
    %v2659 = vpop.f32.mrb[0].mxu0
    %v2660 = vpop.f32.mrb[0].mxu0
    %v2661 = vadd.f32 %v2477, %v2660
    %v2662 = vpop.f32.mrb[0].mxu0
    %2663 = vmatprep.mubr.bf16.mxu0 0
    %2664 = vmatmul.mubr.bf16.gmra.mrb[0].mxu0 %v2453
    %v2665 = vpop.f32.mrb[0].mxu0
    %v2666 = vadd.f32 %v2477, %v2665
    %v2667 = vpop.f32.mrb[0].mxu0
    %v2668 = vpop.f32.mrb[0].mxu0
    %v2669 = vadd.f32 %v2477, %v2668
    %v2670 = vpop.f32.mrb[0].mxu0
    %2671 = vmatprep.mubr.bf16.mxu0 0
    %2672 = vmatmul.mubr.bf16.gmra.mrb[0].mxu0 %v2454
    %v2673 = vpop.f32.mrb[0].mxu0
    %v2674 = vadd.f32 %v2477, %v2673
    %v2675 = vpop.f32.mrb[0].mxu0
    %v2676 = vpop.f32.mrb[0].mxu0
    %v2677 = vadd.f32 %v2477, %v2676
    %v2678 = vpop.f32.mrb[0].mxu0
    %2679 = vmatprep.mubr.bf16.mxu0 0
    %2680 = vmatmul.mubr.bf16.gmra.mrb[0].mxu0 %v2455
    %v2681 = vpop.f32.mrb[0].mxu0
    %v2682 = vadd.f32 %v2477, %v2681
    %v2683 = vpop.f32.mrb[0].mxu0
    %v2684 = vpop.f32.mrb[0].mxu0
    %v2685 = vadd.f32 %v2477, %v2684
    %v2686 = vpop.f32.mrb[0].mxu0
    %2687 = vdwg.mxu0
    %2688 = vst [vmem:[#allocation2] sm:$0xff] %v2562
    %2689 = vst [vmem:[#allocation2 + $0x8] sm:$0xff] %v2565
    %2690 = vst [vmem:[#allocation2 + $0x10] sm:$0xff] %v2570
    %2691 = vst [vmem:[#allocation2 + $0x18] sm:$0xff] %v2573
    %2692 = vst [vmem:[#allocation2 + $0x20] sm:$0xff] %v2578
    %2693 = vst [vmem:[#allocation2 + $0x28] sm:$0xff] %v2581
    %2694 = vst [vmem:[#allocation2 + $0x30] sm:$0xff] %v2586
    %2695 = vst [vmem:[#allocation2 + $0x38] sm:$0xff] %v2589
    %2696 = vst [vmem:[#allocation2 + $0x40] sm:$0xff] %v2594
    %2697 = vst [vmem:[#allocation2 + $0x48] sm:$0xff] %v2597
    %2698 = vst [vmem:[#allocation2 + $0x50] sm:$0xff] %v2602
    %2699 = vst [vmem:[#allocation2 + $0x58] sm:$0xff] %v2605
    %2700 = vst [vmem:[#allocation2 + $0x60] sm:$0xff] %v2610
    %2701 = vst [vmem:[#allocation2 + $0x68] sm:$0xff] %v2613
    %2702 = vst [vmem:[#allocation2 + $0x70] sm:$0xff] %v2618
    %2703 = vst [vmem:[#allocation2 + $0x78] sm:$0xff] %v2621
    %2704 = vst [vmem:[#allocation2 + $0x80] sm:$0xff] %v2626
    %2705 = vst [vmem:[#allocation2 + $0x88] sm:$0xff] %v2629
    %2706 = vst [vmem:[#allocation2 + $0x90] sm:$0xff] %v2634
    %2707 = vst [vmem:[#allocation2 + $0x98] sm:$0xff] %v2637
    %2708 = vst [vmem:[#allocation2 + $0xa0] sm:$0xff] %v2642
    %2709 = vst [vmem:[#allocation2 + $0xa8] sm:$0xff] %v2645
    %2710 = vst [vmem:[#allocation2 + $0xb0] sm:$0xff] %v2650
    %2711 = vst [vmem:[#allocation2 + $0xb8] sm:$0xff] %v2653
    %2712 = vst [vmem:[#allocation2 + $0xc0] sm:$0xff] %v2658
    %2713 = vst [vmem:[#allocation2 + $0xc8] sm:$0xff] %v2661
    %2714 = vst [vmem:[#allocation2 + $0xd0] sm:$0xff] %v2666
    %2715 = vst [vmem:[#allocation2 + $0xd8] sm:$0xff] %v2669
    %2716 = vst [vmem:[#allocation2 + $0xe0] sm:$0xff] %v2674
    %2717 = vst [vmem:[#allocation2 + $0xe8] sm:$0xff] %v2677
    %2718 = vst [vmem:[#allocation2 + $0xf0] sm:$0xff] %v2682
    %2719 = vst [vmem:[#allocation2 + $0xf8] sm:$0xff] %v2685
    // Predicated region
    $region30: #{tpu_custom_call.1} parent=1 // pred_check
      _
    $region31: #{tpu_custom_call.1} parent=1 // pred_check_branch
      %2721 = sbr.rel (0) target = $region33
    $region32: #{tpu_custom_call.1} parent=1 // pred_region
      %s2723 = ssub.s32 4096, 4096
      %2724 = vsyncadd [#allocation3], %s2723
      %s2725 = sshll.u32 [#allocation2], 4
      %s2726 = int_to_ptr.vmem [resolvable:$true] %s2725
      %2731 = dma.vmem_to_hbm [thread:$0]  %s2726, 4096, %s7, [#allocation3], 128, 128, 8
    $region33: #{tpu_custom_call.1} parent=1 // pred_fallthru
      _
    // Predicated region
    $region34: #{tpu_custom_call.1} parent=1 // pred_check
      _
    $region35: #{tpu_custom_call.1} parent=1 // pred_check_branch
      %2733 = sbr.rel (0) target = $region37
    $region36: #{tpu_custom_call.1} parent=1 // pred_region
      %2734 = dma.done [#allocation3], 4096
    $region37: #{tpu_custom_call.1} parent=1 // pred_fallthru
      _
    %2735 = vsyncpa [#allocation3], 1

</llo_original>
